<compile_context>
chip_gen: v6e
topology: v6e:2x2x1
jax: 0.10.0
libtpu: 0.0.40
codegen_flags: <defaults>
</compile_context>

<pallas_src>
import functools
import math

import jax
import jax.numpy as jnp
from jax.experimental import pallas as pl
from jax.experimental.pallas import tpu as pltpu


def _round_up(x, m):
    return (x + m - 1) // m * m


# ----------------------------- Pallas kernels -----------------------------

def _make_fused_linear_kernel(apply_ln, activation, add_residual, eps):
    """(optional LN) -> x @ W + b -> (optional GELU) -> (optional +residual)."""

    def kernel(*refs):
        it = iter(refs)
        x_ref = next(it)
        w_ref = next(it)
        b_ref = next(it)
        g_ref = next(it) if apply_ln else None
        bt_ref = next(it) if apply_ln else None
        r_ref = next(it) if add_residual else None
        o_ref = next(it)

        x = x_ref[...]
        if apply_ln:
            # LayerNorm statistics in f32 (full K is present in this block).
            xf = x.astype(jnp.float32)
            mean = jnp.mean(xf, axis=-1, keepdims=True)
            var = jnp.mean(jnp.square(xf - mean), axis=-1, keepdims=True)
            xf = (xf - mean) * jax.lax.rsqrt(var + eps)
            xf = xf * g_ref[...] + bt_ref[...]
            xin = xf.astype(jnp.bfloat16)
        else:
            xin = x.astype(jnp.bfloat16)

        # bf16 operands, f32 accumulation on the MXU.
        acc = jnp.dot(xin, w_ref[...], preferred_element_type=jnp.float32)
        acc = acc + b_ref[...]
        if activation == "gelu":
            # TODO(synk): PyTorch nn.GELU default is exact erf; tanh approximation
            # used here for a guaranteed-clean EUP lowering in Mosaic.
            acc = jax.nn.gelu(acc, approximate=True)
        if add_residual:
            acc = acc + r_ref[...].astype(jnp.float32)
        o_ref[...] = acc.astype(o_ref.dtype)

    return kernel


def _attention_kernel(qkv_ref, o_ref, *, num_heads, head_dim, embed_dim,
                      seq_len, scale):
    """Per-batch multi-head attention on a packed (S_pad, 3*D) qkv block."""
    s_pad = qkv_ref.shape[1]

    key_mask = None
    if s_pad > seq_len:
        key_mask = jax.lax.broadcasted_iota(jnp.int32, (s_pad, s_pad), 1) < seq_len

    outs = []
    for h in range(num_heads):
        qh = qkv_ref[0, :, pl.ds(h * head_dim, head_dim)]                    # (S, Dh) bf16
        kh = qkv_ref[0, :, pl.ds(embed_dim + h * head_dim, head_dim)]        # (S, Dh) bf16
        vh = qkv_ref[0, :, pl.ds(2 * embed_dim + h * head_dim, head_dim)]    # (S, Dh) bf16

        # scores = q @ k^T (contract head dim, no explicit transpose), f32 acc.
        s = jax.lax.dot_general(qh, kh, (((1,), (1,)), ((), ())),
                                preferred_element_type=jnp.float32) * scale
        if key_mask is not None:
            s = jnp.where(key_mask, s, -1e30)
        m = jnp.max(s, axis=-1, keepdims=True)
        p = jnp.exp(s - m)
        l = jnp.sum(p, axis=-1, keepdims=True)
        p = p * pl.reciprocal(l, approx=True)          # EUP reciprocal
        outs.append(jnp.dot(p.astype(jnp.bfloat16), vh,
                            preferred_element_type=jnp.float32))

    # Single lane-dense (S_pad, D) store.
    o_ref[0] = jnp.concatenate(outs, axis=-1).astype(o_ref.dtype)


def _layernorm_kernel(x_ref, g_ref, b_ref, o_ref, *, eps):
    x = x_ref[...].astype(jnp.float32)
    mean = jnp.mean(x, axis=-1, keepdims=True)
    var = jnp.mean(jnp.square(x - mean), axis=-1, keepdims=True)
    y = (x - mean) * jax.lax.rsqrt(var + eps) * g_ref[...] + b_ref[...]
    o_ref[...] = y.astype(o_ref.dtype)


# ------------------------------ Pallas wrappers ----------------------------

def fused_linear(x, w, b=None, *, ln_gamma=None, ln_beta=None, residual=None,
                 activation=None, eps=1e-5, out_dtype=jnp.bfloat16,
                 tm=256, tn=256):
    """(optional LN over K) -> x @ W + b -> (GELU) -> (+residual).

    x: (M, K) f32 or bf16, w: (K, N), b: (N,), residual: (M, N).
    Tiled over (M, N); K is kept whole (needed for the fused LayerNorm and
    small enough for ViT-sized models).  Weights cast to bf16 at the boundary.
    """
    M, K = x.shape
    N = w.shape[1]
    apply_ln = ln_gamma is not None
    add_res = residual is not None

    # Tile sizes: rows multiple of 16 (bf16 sublane packing), cols multiple of
    # 128 (lanes).  Sized well under the 16/32 MiB default scoped VMEM on
    # v5e/v6e/v7x even at ViT-Base shapes (K<=3072).
    tm_eff = min(tm, _round_up(M, 16))
    tn_eff = min(tn, _round_up(N, 128))
    Mp = _round_up(M, tm_eff)
    Np = _round_up(N, tn_eff)

    xp = jnp.pad(x, ((0, Mp - M), (0, 0))) if Mp != M else x
    wp = w.astype(jnp.bfloat16)
    if Np != N:
        wp = jnp.pad(wp, ((0, 0), (0, Np - N)))
    if b is None:
        b = jnp.zeros((N,), jnp.float32)
    bp = jnp.pad(b.astype(jnp.float32), (0, Np - N)).reshape(1, Np)

    inputs = [xp, wp, bp]
    in_specs = [
        pl.BlockSpec((tm_eff, K), lambda i, j: (i, 0)),      # activations
        pl.BlockSpec((K, tn_eff), lambda i, j: (0, j)),      # weights (M-independent)
        pl.BlockSpec((1, tn_eff), lambda i, j: (0, j)),      # bias
    ]
    if apply_ln:
        inputs += [ln_gamma.astype(jnp.float32).reshape(1, K),
                   ln_beta.astype(jnp.float32).reshape(1, K)]
        in_specs += [pl.BlockSpec((1, K), lambda i, j: (0, 0)),
                     pl.BlockSpec((1, K), lambda i, j: (0, 0))]
    if add_res:
        rp = residual
        if Mp != M or Np != N:
            rp = jnp.pad(rp, ((0, Mp - M), (0, Np - N)))
        inputs.append(rp)
        in_specs.append(pl.BlockSpec((tm_eff, tn_eff), lambda i, j: (i, j)))

    kernel = _make_fused_linear_kernel(apply_ln, activation, add_res, eps)
    out = pl.pallas_call(
        kernel,
        out_shape=jax.ShapeDtypeStruct((Mp, Np), out_dtype),
        grid=(Mp // tm_eff, Np // tn_eff),
        in_specs=in_specs,
        out_specs=pl.BlockSpec((tm_eff, tn_eff), lambda i, j: (i, j)),
        compiler_params=pltpu.CompilerParams(
            dimension_semantics=("parallel", "parallel")),
    )(*inputs)

    if Mp != M or Np != N:
        out = out[:M, :N]
    return out


def pallas_attention(qkv, num_heads):
    """qkv: (B, S, 3*D) bf16 (lane-dense packed q|k|v) -> (B, S, D) bf16."""
    B, S, threeD = qkv.shape
    D = threeD // 3
    Dh = D // num_heads
    scale = 1.0 / math.sqrt(Dh)

    S_pad = _round_up(S, 16)
    if S_pad != S:
        qkv = jnp.pad(qkv, ((0, 0), (0, S_pad - S), (0, 0)))

    kernel = functools.partial(_attention_kernel, num_heads=num_heads,
                               head_dim=Dh, embed_dim=D, seq_len=S, scale=scale)
    out = pl.pallas_call(
        kernel,
        out_shape=jax.ShapeDtypeStruct((B, S_pad, D), jnp.bfloat16),
        grid=(B,),
        in_specs=[pl.BlockSpec((1, S_pad, threeD), lambda b: (b, 0, 0))],
        out_specs=pl.BlockSpec((1, S_pad, D), lambda b: (b, 0, 0)),
        compiler_params=pltpu.CompilerParams(dimension_semantics=("parallel",)),
    )(qkv.astype(jnp.bfloat16))
    return out[:, :S, :]


def pallas_layernorm(x, gamma, beta, eps=1e-5, tm=512):
    """Standalone LN (used only for the final norm on the cls rows)."""
    M, D = x.shape
    tm_eff = min(tm, _round_up(M, 8))
    Mp = _round_up(M, tm_eff)
    xp = jnp.pad(x, ((0, Mp - M), (0, 0))) if Mp != M else x
    out = pl.pallas_call(
        functools.partial(_layernorm_kernel, eps=eps),
        out_shape=jax.ShapeDtypeStruct((Mp, D), jnp.float32),
        grid=(Mp // tm_eff,),
        in_specs=[pl.BlockSpec((tm_eff, D), lambda i: (i, 0)),
                  pl.BlockSpec((1, D), lambda i: (0, 0)),
                  pl.BlockSpec((1, D), lambda i: (0, 0))],
        out_specs=pl.BlockSpec((tm_eff, D), lambda i: (i, 0)),
        compiler_params=pltpu.CompilerParams(dimension_semantics=("parallel",)),
    )(xp, gamma.astype(jnp.float32).reshape(1, D),
      beta.astype(jnp.float32).reshape(1, D))
    return out[:M] if Mp != M else out


# ------------------------------ Parameter init ------------------------------

def init_params(key, cfg):
    C = cfg["in_channels"]
    P = cfg["patch_size"]
    D = cfg["embed_dim"]
    L = cfg["num_layers"]
    NC = cfg["num_class"]
    S = (cfg["img_size"] // P) ** 2 + 1  # patches + cls token
    hidden = cfg["mlp_ratio"] * D

    keys = iter(jax.random.split(key, 8 + 12 * L))
    std = 0.02

    def nrm(shape):
        return std * jax.random.normal(next(keys), shape, dtype=jnp.float32)

    params = {
        "patch_w": nrm((D, C, P, P)),          # Conv2d weight layout (out, in, kH, kW)
        "patch_b": jnp.zeros((D,), jnp.float32),
        "cls_token": nrm((1, 1, D)),
        "pos_embed": nrm((1, S, D)),
        "lnf_g": jnp.ones((D,), jnp.float32),
        "lnf_b": jnp.zeros((D,), jnp.float32),
        "head_w": nrm((D, NC)),                # lm_head, no bias
        "blocks": [],
    }
    for _ in range(L):
        blk = {
            "ln1_g": jnp.ones((D,), jnp.float32),
            "ln1_b": jnp.zeros((D,), jnp.float32),
            "qkv_w": nrm((D, 3 * D)),
            "qkv_b": jnp.zeros((3 * D,), jnp.float32),
            "proj_w": nrm((D, D)),
            "proj_b": jnp.zeros((D,), jnp.float32),
            "ln2_g": jnp.ones((D,), jnp.float32),
            "ln2_b": jnp.zeros((D,), jnp.float32),
            "fc1_w": nrm((D, hidden)),
            "fc1_b": jnp.zeros((hidden,), jnp.float32),
            "fc2_w": nrm((hidden, D)),
            "fc2_b": jnp.zeros((D,), jnp.float32),
        }
        params["blocks"].append(blk)
    return params


# ------------------------------- Forward pass -------------------------------

def vit_forward(params, x, cfg):
    B, C, Himg, Wimg = x.shape
    P = cfg["patch_size"]
    D = cfg["embed_dim"]
    H = cfg["num_heads"]
    nh, nw = Himg // P, Wimg // P
    n_patch = nh * nw

    # --- Patch_Embedding: Conv2d(k=P, stride=P) as patchify + fused matmul ---
    patches = (x.reshape(B, C, nh, P, nw, P)
                .transpose(0, 2, 4, 1, 3, 5)          # (B, nh, nw, C, P, P)
                .reshape(B * n_patch, C * P * P))
    w_patch = params["patch_w"].reshape(D, C * P * P).T  # (C*P*P, D)
    tok = fused_linear(patches, w_patch, params["patch_b"],
                       out_dtype=jnp.float32).reshape(B, n_patch, D)

    cls = jnp.broadcast_to(params["cls_token"], (B, 1, D))
    xseq = jnp.concatenate([cls, tok], axis=1) + params["pos_embed"]
    S = xseq.shape[1]
    M = B * S

    # --- Transformer blocks (pre-LN MHA + pre-LN MLP), fused kernels ---------
    for blk in params["blocks"]:
        x2d = xseq.reshape(M, D)                       # f32 residual stream
        # LN1 fused into the QKV projection; bf16 packed output (M, 3D).
        qkv = fused_linear(x2d, blk["qkv_w"], blk["qkv_b"],
                           ln_gamma=blk["ln1_g"], ln_beta=blk["ln1_b"],
                           out_dtype=jnp.bfloat16)
        # Lane-dense multi-head attention, heads sliced in-kernel.
        attn = pallas_attention(qkv.reshape(B, S, 3 * D), num_heads=H)
        # Output projection with the residual add fused in (f32 out).
        x2d = fused_linear(attn.reshape(M, D), blk["proj_w"], blk["proj_b"],
                           residual=x2d, out_dtype=jnp.float32)
        # LN2 + FC1 + GELU fused; bf16 hidden activation.
        hmid = fused_linear(x2d, blk["fc1_w"], blk["fc1_b"],
                            ln_gamma=blk["ln2_g"], ln_beta=blk["ln2_b"],
                            activation="gelu", out_dtype=jnp.bfloat16)
        # FC2 with the residual add fused in (f32 out).
        x2d = fused_linear(hmid, blk["fc2_w"], blk["fc2_b"],
                           residual=x2d, out_dtype=jnp.float32)
        xseq = x2d.reshape(B, S, D)

    # --- Final norm + lm_head on cls token -----------------------------------
    # LayerNorm is per-token, so normalizing only the cls rows is identical to
    # final_norm(xseq)[:, 0, :].
    cls_out = pallas_layernorm(xseq[:, 0, :], params["lnf_g"], params["lnf_b"])
    # Tiny head matmul (num_class << 128 lanes): plain JAX, not worth a kernel.
    logits = cls_out @ params["head_w"]
    return logits


# ----------------------------------- main -----------------------------------

if __name__ == "__main__":
    cfg = {
        "img_size": 16,
        "patch_size": 4,
        "in_channels": 3,
        "embed_dim": 32,
        "num_heads": 4,
        "num_layers": 2,
        "mlp_ratio": 4,
        "num_class": 10,
    }

    key = jax.random.PRNGKey(0)
    kx, kp = jax.random.split(key)
    x = jax.random.normal(kx, (2, cfg["in_channels"], cfg["img_size"],
                               cfg["img_size"]), dtype=jnp.float32)
    params = init_params(kp, cfg)

    logits = jax.jit(functools.partial(vit_forward, cfg=cfg))(params, x)
    logits = jax.block_until_ready(logits)

    assert logits.shape == (2, cfg["num_class"]), logits.shape
    assert jnp.all(jnp.isfinite(logits))
    print("KERNEL_OK")
</pallas_src>

<mosaic_0001>
module attributes {stable_mosaic.version = 11 : i64} {
  func.func @kernel(%arg0: i32, %arg1: i32, %arg2: memref<32x48xf32, #tpu.memory_space<vmem>>, %arg3: memref<48x128xbf16, #tpu.memory_space<vmem>>, %arg4: memref<1x128xf32, #tpu.memory_space<vmem>>, %arg5: memref<32x128xf32, #tpu.memory_space<vmem>>) attributes {dimension_semantics = [#tpu.dimension_semantics<parallel>, #tpu.dimension_semantics<parallel>], iteration_bounds = array<i64: 1, 1>, scalar_prefetch = 0 : i64, scratch_operands = 0 : i64, tpu.core_type = #tpu.core_type<tc>, window_params = [{transform_indices = @transform_0, window_bounds = array<i64: 32, 48>}, {transform_indices = @transform_1, window_bounds = array<i64: 48, 128>}, {transform_indices = @transform_2, window_bounds = array<i64: 1, 128>}, {transform_indices = @transform_3, window_bounds = array<i64: 32, 128>}]} {
    %c0 = arith.constant 0 : index
    %c0_0 = arith.constant 0 : index
    %0 = vector.load %arg2[%c0, %c0_0] : memref<32x48xf32, #tpu.memory_space<vmem>>, vector<32x48xf32>
    %1 = arith.truncf %0 : vector<32x48xf32> to vector<32x48xbf16>
    %c0_1 = arith.constant 0 : index
    %c0_2 = arith.constant 0 : index
    %2 = vector.load %arg3[%c0_1, %c0_2] : memref<48x128xbf16, #tpu.memory_space<vmem>>, vector<48x128xbf16>
    %cst = arith.constant dense<0.000000e+00> : vector<32x128xf32>
    %3 = tpu.matmul %1, %2, %cst {dimension_numbers = #tpu.dot_dimension_numbers<[1], [0], [0], [1], [0, 0, 1, 1], [], []>} : vector<32x48xbf16>, vector<48x128xbf16>, vector<32x128xf32> -> vector<32x128xf32>
    %c0_3 = arith.constant 0 : index
    %c0_4 = arith.constant 0 : index
    %4 = vector.load %arg4[%c0_3, %c0_4] : memref<1x128xf32, #tpu.memory_space<vmem>>, vector<1x128xf32>
    %5 = vector.broadcast %4 : vector<1x128xf32> to vector<32x128xf32>
    %6 = arith.addf %3, %5 : vector<32x128xf32>
    %c0_5 = arith.constant 0 : index
    %c0_6 = arith.constant 0 : index
    %7 = vector.load %arg5[%c0_5, %c0_6] : memref<32x128xf32, #tpu.memory_space<vmem>>, vector<32x128xf32>
    tpu.vector_store %arg5[%c0_5, %c0_6], %6 {strides = array<i32>} : memref<32x128xf32, #tpu.memory_space<vmem>>, vector<32x128xf32>,
    return
  }
  func.func @transform_0(%arg0: i32, %arg1: i32) -> (i32, i32) {
    %c0_i32 = arith.constant 0 : i32
    %c0_i32_0 = arith.constant 0 : i32
    return %arg0, %c0_i32 : i32, i32
  }
  func.func @transform_1(%arg0: i32, %arg1: i32) -> (i32, i32) {
    %c0_i32 = arith.constant 0 : i32
    %c0_i32_0 = arith.constant 0 : i32
    return %c0_i32, %arg1 : i32, i32
  }
  func.func @transform_2(%arg0: i32, %arg1: i32) -> (i32, i32) {
    %c0_i32 = arith.constant 0 : i32
    %c0_i32_0 = arith.constant 0 : i32
    return %c0_i32, %arg1 : i32, i32
  }
  func.func @transform_3(%arg0: i32, %arg1: i32) -> (i32, i32) {
    %c0_i32 = arith.constant 0 : i32
    return %arg0, %arg1 : i32, i32
  }
}

module attributes {stable_mosaic.version = 11 : i64} {
  func.func @kernel(%arg0: i32, %arg1: i32, %arg2: memref<48x32xf32, #tpu.memory_space<vmem>>, %arg3: memref<32x128xbf16, #tpu.memory_space<vmem>>, %arg4: memref<1x128xf32, #tpu.memory_space<vmem>>, %arg5: memref<1x32xf32, #tpu.memory_space<vmem>>, %arg6: memref<1x32xf32, #tpu.memory_space<vmem>>, %arg7: memref<48x128xbf16, #tpu.memory_space<vmem>>) attributes {dimension_semantics = [#tpu.dimension_semantics<parallel>, #tpu.dimension_semantics<parallel>], iteration_bounds = array<i64: 1, 1>, scalar_prefetch = 0 : i64, scratch_operands = 0 : i64, tpu.core_type = #tpu.core_type<tc>, window_params = [{transform_indices = @transform_0, window_bounds = array<i64: 48, 32>}, {transform_indices = @transform_1, window_bounds = array<i64: 32, 128>}, {transform_indices = @transform_2, window_bounds = array<i64: 1, 128>}, {pipeline_mode = #tpu.pipeline_mode<synchronous>, transform_indices = @transform_3, window_bounds = array<i64: 1, 32>}, {pipeline_mode = #tpu.pipeline_mode<synchronous>, transform_indices = @transform_4, window_bounds = array<i64: 1, 32>}, {transform_indices = @transform_5, window_bounds = array<i64: 48, 128>}]} {
    %c0 = arith.constant 0 : index
    %c0_0 = arith.constant 0 : index
    %0 = vector.load %arg2[%c0, %c0_0] : memref<48x32xf32, #tpu.memory_space<vmem>>, vector<48x32xf32>
    %cst = arith.constant dense<0.000000e+00> : vector<48xf32>
    %1 = vector.multi_reduction <add>, %0, %cst [1] : vector<48x32xf32> to vector<48xf32>
    %2 = vector.shape_cast %1 : vector<48xf32> to vector<48x1xf32>
    %cst_1 = arith.constant 3.200000e+01 : f32
    %3 = vector.broadcast %cst_1 : f32 to vector<48x1xf32>
    %4 = arith.divf %2, %3 : vector<48x1xf32>
    %5 = vector.broadcast %4 : vector<48x1xf32> to vector<48x32xf32>
    %6 = arith.subf %0, %5 : vector<48x32xf32>
    %7 = arith.mulf %6, %6 : vector<48x32xf32>
    %cst_2 = arith.constant dense<0.000000e+00> : vector<48xf32>
    %8 = vector.multi_reduction <add>, %7, %cst_2 [1] : vector<48x32xf32> to vector<48xf32>
    %9 = vector.shape_cast %8 : vector<48xf32> to vector<48x1xf32>
    %cst_3 = arith.constant 3.200000e+01 : f32
    %10 = vector.broadcast %cst_3 : f32 to vector<48x1xf32>
    %11 = arith.divf %9, %10 : vector<48x1xf32>
    %12 = vector.broadcast %4 : vector<48x1xf32> to vector<48x32xf32>
    %13 = arith.subf %0, %12 : vector<48x32xf32>
    %cst_4 = arith.constant 9.99999974E-6 : f32
    %14 = vector.broadcast %cst_4 : f32 to vector<48x1xf32>
    %15 = arith.addf %11, %14 : vector<48x1xf32>
    %16 = math.rsqrt %15 : vector<48x1xf32>
    %17 = vector.broadcast %16 : vector<48x1xf32> to vector<48x32xf32>
    %18 = arith.mulf %13, %17 : vector<48x32xf32>
    %c0_5 = arith.constant 0 : index
    %c0_6 = arith.constant 0 : index
    %19 = vector.load %arg5[%c0_5, %c0_6] : memref<1x32xf32, #tpu.memory_space<vmem>>, vector<1x32xf32>
    %20 = vector.broadcast %19 : vector<1x32xf32> to vector<48x32xf32>
    %21 = arith.mulf %18, %20 : vector<48x32xf32>
    %c0_7 = arith.constant 0 : index
    %c0_8 = arith.constant 0 : index
    %22 = vector.load %arg6[%c0_7, %c0_8] : memref<1x32xf32, #tpu.memory_space<vmem>>, vector<1x32xf32>
    %23 = vector.broadcast %22 : vector<1x32xf32> to vector<48x32xf32>
    %24 = arith.addf %21, %23 : vector<48x32xf32>
    %25 = arith.truncf %24 : vector<48x32xf32> to vector<48x32xbf16>
    %c0_9 = arith.constant 0 : index
    %c0_10 = arith.constant 0 : index
    %26 = vector.load %arg3[%c0_9, %c0_10] : memref<32x128xbf16, #tpu.memory_space<vmem>>, vector<32x128xbf16>
    %cst_11 = arith.constant dense<0.000000e+00> : vector<48x128xf32>
    %27 = tpu.matmul %25, %26, %cst_11 {dimension_numbers = #tpu.dot_dimension_numbers<[1], [0], [0], [1], [0, 0, 1, 1], [], []>} : vector<48x32xbf16>, vector<32x128xbf16>, vector<48x128xf32> -> vector<48x128xf32>
    %c0_12 = arith.constant 0 : index
    %c0_13 = arith.constant 0 : index
    %28 = vector.load %arg4[%c0_12, %c0_13] : memref<1x128xf32, #tpu.memory_space<vmem>>, vector<1x128xf32>
    %29 = vector.broadcast %28 : vector<1x128xf32> to vector<48x128xf32>
    %30 = arith.addf %27, %29 : vector<48x128xf32>
    %31 = arith.truncf %30 : vector<48x128xf32> to vector<48x128xbf16>
    %c0_14 = arith.constant 0 : index
    %c0_15 = arith.constant 0 : index
    %32 = vector.load %arg7[%c0_14, %c0_15] : memref<48x128xbf16, #tpu.memory_space<vmem>>, vector<48x128xbf16>
    tpu.vector_store %arg7[%c0_14, %c0_15], %31 {strides = array<i32>} : memref<48x128xbf16, #tpu.memory_space<vmem>>, vector<48x128xbf16>,
    return
  }
  func.func @transform_0(%arg0: i32, %arg1: i32) -> (i32, i32) {
    %c0_i32 = arith.constant 0 : i32
    %c0_i32_0 = arith.constant 0 : i32
    return %arg0, %c0_i32 : i32, i32
  }
  func.func @transform_1(%arg0: i32, %arg1: i32) -> (i32, i32) {
    %c0_i32 = arith.constant 0 : i32
    %c0_i32_0 = arith.constant 0 : i32
    return %c0_i32, %arg1 : i32, i32
  }
  func.func @transform_2(%arg0: i32, %arg1: i32) -> (i32, i32) {
    %c0_i32 = arith.constant 0 : i32
    %c0_i32_0 = arith.constant 0 : i32
    return %c0_i32, %arg1 : i32, i32
  }
  func.func @transform_3(%arg0: i32, %arg1: i32) -> (i32, i32) {
    %c0_i32 = arith.constant 0 : i32
    %c0_i32_0 = arith.constant 0 : i32
    %c0_i32_1 = arith.constant 0 : i32
    return %c0_i32, %c0_i32_0 : i32, i32
  }
  func.func @transform_4(%arg0: i32, %arg1: i32) -> (i32, i32) {
    %c0_i32 = arith.constant 0 : i32
    %c0_i32_0 = arith.constant 0 : i32
    %c0_i32_1 = arith.constant 0 : i32
    return %c0_i32, %c0_i32_0 : i32, i32
  }
  func.func @transform_5(%arg0: i32, %arg1: i32) -> (i32, i32) {
    %c0_i32 = arith.constant 0 : i32
    return %arg0, %arg1 : i32, i32
  }
}

module attributes {stable_mosaic.version = 11 : i64} {
  func.func @_attention_kernel(%arg0: i32, %arg1: memref<1x32x96xbf16, #tpu.memory_space<vmem>>, %arg2: memref<1x32x32xbf16, #tpu.memory_space<vmem>>) attributes {dimension_semantics = [#tpu.dimension_semantics<parallel>], iteration_bounds = array<i64: 2>, scalar_prefetch = 0 : i64, scratch_operands = 0 : i64, tpu.core_type = #tpu.core_type<tc>, window_params = [{transform_indices = @transform_0, window_bounds = array<i64: 1, 32, 96>}, {transform_indices = @transform_1, window_bounds = array<i64: 1, 32, 32>}]} {
    %0 = tpu.iota {dimensions = array<i32: 1>} : vector<32x32xi32>
    %c17_i32 = arith.constant 17 : i32
    %1 = vector.broadcast %c17_i32 : i32 to vector<32x32xi32>
    %2 = arith.cmpi slt, %0, %1 : vector<32x32xi32>
    %c0 = arith.constant 0 : index
    %c0_0 = arith.constant 0 : index
    %c0_1 = arith.constant 0 : index
    %3 = vector.load %arg1[%c0, %c0_0, %c0_1] : memref<1x32x96xbf16, #tpu.memory_space<vmem>>, vector<1x32x8xbf16>
    %4 = vector.shape_cast %3 : vector<1x32x8xbf16> to vector<32x8xbf16>
    %c0_2 = arith.constant 0 : index
    %c0_3 = arith.constant 0 : index
    %c32 = arith.constant 32 : index
    %5 = vector.load %arg1[%c0_2, %c0_3, %c32] : memref<1x32x96xbf16, #tpu.memory_space<vmem>>, vector<1x32x8xbf16>
    %6 = vector.shape_cast %5 : vector<1x32x8xbf16> to vector<32x8xbf16>
    %c0_4 = arith.constant 0 : index
    %c0_5 = arith.constant 0 : index
    %c64 = arith.constant 64 : index
    %7 = vector.load %arg1[%c0_4, %c0_5, %c64] : memref<1x32x96xbf16, #tpu.memory_space<vmem>>, vector<1x32x8xbf16>
    %8 = vector.shape_cast %7 : vector<1x32x8xbf16> to vector<32x8xbf16>
    %cst = arith.constant dense<0.000000e+00> : vector<32x32xf32>
    %9 = tpu.matmul %4, %6, %cst {dimension_numbers = #tpu.dot_dimension_numbers<[1], [1], [0], [0], [0, 0, 1, 0], [], []>} : vector<32x8xbf16>, vector<32x8xbf16>, vector<32x32xf32> -> vector<32x32xf32>
    %cst_6 = arith.constant 0.353553385 : f32
    %10 = vector.broadcast %cst_6 : f32 to vector<32x32xf32>
    %11 = arith.mulf %9, %10 : vector<32x32xf32>
    %cst_7 = arith.constant -1.000000e+30 : f32
    %12 = vector.broadcast %cst_7 : f32 to vector<32x32xf32>
    %13 = arith.select %2, %11, %12 : vector<32x32xi1>, vector<32x32xf32>
    %cst_8 = arith.constant dense<0xFF800000> : vector<32xf32>
    %14 = vector.multi_reduction <maximumf>, %13, %cst_8 [1] : vector<32x32xf32> to vector<32xf32>
    %15 = vector.shape_cast %14 : vector<32xf32> to vector<32x1xf32>
    %16 = vector.broadcast %15 : vector<32x1xf32> to vector<32x32xf32>
    %17 = arith.subf %13, %16 : vector<32x32xf32>
    %18 = math.exp %17 : vector<32x32xf32>
    %cst_9 = arith.constant dense<0.000000e+00> : vector<32xf32>
    %19 = vector.multi_reduction <add>, %18, %cst_9 [1] : vector<32x32xf32> to vector<32xf32>
    %20 = vector.shape_cast %19 : vector<32xf32> to vector<32x1xf32>
    %21 = tpu.reciprocal %20 {approx = true} : vector<32x1xf32> -> vector<32x1xf32>
    %22 = vector.broadcast %21 : vector<32x1xf32> to vector<32x32xf32>
    %23 = arith.mulf %18, %22 : vector<32x32xf32>
    %24 = arith.truncf %23 : vector<32x32xf32> to vector<32x32xbf16>
    %cst_10 = arith.constant dense<0.000000e+00> : vector<32x8xf32>
    %25 = tpu.matmul %24, %8, %cst_10 {dimension_numbers = #tpu.dot_dimension_numbers<[1], [0], [0], [1], [0, 0, 1, 1], [], []>} : vector<32x32xbf16>, vector<32x8xbf16>, vector<32x8xf32> -> vector<32x8xf32>
    %c0_11 = arith.constant 0 : index
    %c0_12 = arith.constant 0 : index
    %c8 = arith.constant 8 : index
    %26 = vector.load %arg1[%c0_11, %c0_12, %c8] : memref<1x32x96xbf16, #tpu.memory_space<vmem>>, vector<1x32x8xbf16>
    %27 = vector.shape_cast %26 : vector<1x32x8xbf16> to vector<32x8xbf16>
    %c0_13 = arith.constant 0 : index
    %c0_14 = arith.constant 0 : index
    %c40 = arith.constant 40 : index
    %28 = vector.load %arg1[%c0_13, %c0_14, %c40] : memref<1x32x96xbf16, #tpu.memory_space<vmem>>, vector<1x32x8xbf16>
    %29 = vector.shape_cast %28 : vector<1x32x8xbf16> to vector<32x8xbf16>
    %c0_15 = arith.constant 0 : index
    %c0_16 = arith.constant 0 : index
    %c72 = arith.constant 72 : index
    %30 = vector.load %arg1[%c0_15, %c0_16, %c72] : memref<1x32x96xbf16, #tpu.memory_space<vmem>>, vector<1x32x8xbf16>
    %31 = vector.shape_cast %30 : vector<1x32x8xbf16> to vector<32x8xbf16>
    %cst_17 = arith.constant dense<0.000000e+00> : vector<32x32xf32>
    %32 = tpu.matmul %27, %29, %cst_17 {dimension_numbers = #tpu.dot_dimension_numbers<[1], [1], [0], [0], [0, 0, 1, 0], [], []>} : vector<32x8xbf16>, vector<32x8xbf16>, vector<32x32xf32> -> vector<32x32xf32>
    %cst_18 = arith.constant 0.353553385 : f32
    %33 = vector.broadcast %cst_18 : f32 to vector<32x32xf32>
    %34 = arith.mulf %32, %33 : vector<32x32xf32>
    %cst_19 = arith.constant -1.000000e+30 : f32
    %35 = vector.broadcast %cst_19 : f32 to vector<32x32xf32>
    %36 = arith.select %2, %34, %35 : vector<32x32xi1>, vector<32x32xf32>
    %cst_20 = arith.constant dense<0xFF800000> : vector<32xf32>
    %37 = vector.multi_reduction <maximumf>, %36, %cst_20 [1] : vector<32x32xf32> to vector<32xf32>
    %38 = vector.shape_cast %37 : vector<32xf32> to vector<32x1xf32>
    %39 = vector.broadcast %38 : vector<32x1xf32> to vector<32x32xf32>
    %40 = arith.subf %36, %39 : vector<32x32xf32>
    %41 = math.exp %40 : vector<32x32xf32>
    %cst_21 = arith.constant dense<0.000000e+00> : vector<32xf32>
    %42 = vector.multi_reduction <add>, %41, %cst_21 [1] : vector<32x32xf32> to vector<32xf32>
    %43 = vector.shape_cast %42 : vector<32xf32> to vector<32x1xf32>
    %44 = tpu.reciprocal %43 {approx = true} : vector<32x1xf32> -> vector<32x1xf32>
    %45 = vector.broadcast %44 : vector<32x1xf32> to vector<32x32xf32>
    %46 = arith.mulf %41, %45 : vector<32x32xf32>
    %47 = arith.truncf %46 : vector<32x32xf32> to vector<32x32xbf16>
    %cst_22 = arith.constant dense<0.000000e+00> : vector<32x8xf32>
    %48 = tpu.matmul %47, %31, %cst_22 {dimension_numbers = #tpu.dot_dimension_numbers<[1], [0], [0], [1], [0, 0, 1, 1], [], []>} : vector<32x32xbf16>, vector<32x8xbf16>, vector<32x8xf32> -> vector<32x8xf32>
    %c0_23 = arith.constant 0 : index
    %c0_24 = arith.constant 0 : index
    %c16 = arith.constant 16 : index
    %49 = vector.load %arg1[%c0_23, %c0_24, %c16] : memref<1x32x96xbf16, #tpu.memory_space<vmem>>, vector<1x32x8xbf16>
    %50 = vector.shape_cast %49 : vector<1x32x8xbf16> to vector<32x8xbf16>
    %c0_25 = arith.constant 0 : index
    %c0_26 = arith.constant 0 : index
    %c48 = arith.constant 48 : index
    %51 = vector.load %arg1[%c0_25, %c0_26, %c48] : memref<1x32x96xbf16, #tpu.memory_space<vmem>>, vector<1x32x8xbf16>
    %52 = vector.shape_cast %51 : vector<1x32x8xbf16> to vector<32x8xbf16>
    %c0_27 = arith.constant 0 : index
    %c0_28 = arith.constant 0 : index
    %c80 = arith.constant 80 : index
    %53 = vector.load %arg1[%c0_27, %c0_28, %c80] : memref<1x32x96xbf16, #tpu.memory_space<vmem>>, vector<1x32x8xbf16>
    %54 = vector.shape_cast %53 : vector<1x32x8xbf16> to vector<32x8xbf16>
    %cst_29 = arith.constant dense<0.000000e+00> : vector<32x32xf32>
    %55 = tpu.matmul %50, %52, %cst_29 {dimension_numbers = #tpu.dot_dimension_numbers<[1], [1], [0], [0], [0, 0, 1, 0], [], []>} : vector<32x8xbf16>, vector<32x8xbf16>, vector<32x32xf32> -> vector<32x32xf32>
    %cst_30 = arith.constant 0.353553385 : f32
    %56 = vector.broadcast %cst_30 : f32 to vector<32x32xf32>
    %57 = arith.mulf %55, %56 : vector<32x32xf32>
    %cst_31 = arith.constant -1.000000e+30 : f32
    %58 = vector.broadcast %cst_31 : f32 to vector<32x32xf32>
    %59 = arith.select %2, %57, %58 : vector<32x32xi1>, vector<32x32xf32>
    %cst_32 = arith.constant dense<0xFF800000> : vector<32xf32>
    %60 = vector.multi_reduction <maximumf>, %59, %cst_32 [1] : vector<32x32xf32> to vector<32xf32>
    %61 = vector.shape_cast %60 : vector<32xf32> to vector<32x1xf32>
    %62 = vector.broadcast %61 : vector<32x1xf32> to vector<32x32xf32>
    %63 = arith.subf %59, %62 : vector<32x32xf32>
    %64 = math.exp %63 : vector<32x32xf32>
    %cst_33 = arith.constant dense<0.000000e+00> : vector<32xf32>
    %65 = vector.multi_reduction <add>, %64, %cst_33 [1] : vector<32x32xf32> to vector<32xf32>
    %66 = vector.shape_cast %65 : vector<32xf32> to vector<32x1xf32>
    %67 = tpu.reciprocal %66 {approx = true} : vector<32x1xf32> -> vector<32x1xf32>
    %68 = vector.broadcast %67 : vector<32x1xf32> to vector<32x32xf32>
    %69 = arith.mulf %64, %68 : vector<32x32xf32>
    %70 = arith.truncf %69 : vector<32x32xf32> to vector<32x32xbf16>
    %cst_34 = arith.constant dense<0.000000e+00> : vector<32x8xf32>
    %71 = tpu.matmul %70, %54, %cst_34 {dimension_numbers = #tpu.dot_dimension_numbers<[1], [0], [0], [1], [0, 0, 1, 1], [], []>} : vector<32x32xbf16>, vector<32x8xbf16>, vector<32x8xf32> -> vector<32x8xf32>
    %c0_35 = arith.constant 0 : index
    %c0_36 = arith.constant 0 : index
    %c24 = arith.constant 24 : index
    %72 = vector.load %arg1[%c0_35, %c0_36, %c24] : memref<1x32x96xbf16, #tpu.memory_space<vmem>>, vector<1x32x8xbf16>
    %73 = vector.shape_cast %72 : vector<1x32x8xbf16> to vector<32x8xbf16>
    %c0_37 = arith.constant 0 : index
    %c0_38 = arith.constant 0 : index
    %c56 = arith.constant 56 : index
    %74 = vector.load %arg1[%c0_37, %c0_38, %c56] : memref<1x32x96xbf16, #tpu.memory_space<vmem>>, vector<1x32x8xbf16>
    %75 = vector.shape_cast %74 : vector<1x32x8xbf16> to vector<32x8xbf16>
    %c0_39 = arith.constant 0 : index
    %c0_40 = arith.constant 0 : index
    %c88 = arith.constant 88 : index
    %76 = vector.load %arg1[%c0_39, %c0_40, %c88] : memref<1x32x96xbf16, #tpu.memory_space<vmem>>, vector<1x32x8xbf16>
    %77 = vector.shape_cast %76 : vector<1x32x8xbf16> to vector<32x8xbf16>
    %cst_41 = arith.constant dense<0.000000e+00> : vector<32x32xf32>
    %78 = tpu.matmul %73, %75, %cst_41 {dimension_numbers = #tpu.dot_dimension_numbers<[1], [1], [0], [0], [0, 0, 1, 0], [], []>} : vector<32x8xbf16>, vector<32x8xbf16>, vector<32x32xf32> -> vector<32x32xf32>
    %cst_42 = arith.constant 0.353553385 : f32
    %79 = vector.broadcast %cst_42 : f32 to vector<32x32xf32>
    %80 = arith.mulf %78, %79 : vector<32x32xf32>
    %cst_43 = arith.constant -1.000000e+30 : f32
    %81 = vector.broadcast %cst_43 : f32 to vector<32x32xf32>
    %82 = arith.select %2, %80, %81 : vector<32x32xi1>, vector<32x32xf32>
    %cst_44 = arith.constant dense<0xFF800000> : vector<32xf32>
    %83 = vector.multi_reduction <maximumf>, %82, %cst_44 [1] : vector<32x32xf32> to vector<32xf32>
    %84 = vector.shape_cast %83 : vector<32xf32> to vector<32x1xf32>
    %85 = vector.broadcast %84 : vector<32x1xf32> to vector<32x32xf32>
    %86 = arith.subf %82, %85 : vector<32x32xf32>
    %87 = math.exp %86 : vector<32x32xf32>
    %cst_45 = arith.constant dense<0.000000e+00> : vector<32xf32>
    %88 = vector.multi_reduction <add>, %87, %cst_45 [1] : vector<32x32xf32> to vector<32xf32>
    %89 = vector.shape_cast %88 : vector<32xf32> to vector<32x1xf32>
    %90 = tpu.reciprocal %89 {approx = true} : vector<32x1xf32> -> vector<32x1xf32>
    %91 = vector.broadcast %90 : vector<32x1xf32> to vector<32x32xf32>
    %92 = arith.mulf %87, %91 : vector<32x32xf32>
    %93 = arith.truncf %92 : vector<32x32xf32> to vector<32x32xbf16>
    %cst_46 = arith.constant dense<0.000000e+00> : vector<32x8xf32>
    %94 = tpu.matmul %93, %77, %cst_46 {dimension_numbers = #tpu.dot_dimension_numbers<[1], [0], [0], [1], [0, 0, 1, 1], [], []>} : vector<32x32xbf16>, vector<32x8xbf16>, vector<32x8xf32> -> vector<32x8xf32>
    %95 = tpu.concatenate %25, %48, %71, %94 in 1 : vector<32x8xf32>, vector<32x8xf32>, vector<32x8xf32>, vector<32x8xf32> -> vector<32x32xf32>
    %96 = arith.truncf %95 : vector<32x32xf32> to vector<32x32xbf16>
    %c0_47 = arith.constant 0 : index
    %c0_48 = arith.constant 0 : index
    %c0_49 = arith.constant 0 : index
    %97 = vector.load %arg2[%c0_47, %c0_48, %c0_49] : memref<1x32x32xbf16, #tpu.memory_space<vmem>>, vector<1x32x32xbf16>
    %98 = vector.shape_cast %97 : vector<1x32x32xbf16> to vector<32x32xbf16>
    %99 = vector.shape_cast %96 : vector<32x32xbf16> to vector<1x32x32xbf16>
    tpu.vector_store %arg2[%c0_47, %c0_48, %c0_49], %99 {strides = array<i32>} : memref<1x32x32xbf16, #tpu.memory_space<vmem>>, vector<1x32x32xbf16>,
    return
  }
  func.func @transform_0(%arg0: i32) -> (i32, i32, i32) {
    %c0_i32 = arith.constant 0 : i32
    %c0_i32_0 = arith.constant 0 : i32
    %c0_i32_1 = arith.constant 0 : i32
    return %arg0, %c0_i32, %c0_i32_0 : i32, i32, i32
  }
  func.func @transform_1(%arg0: i32) -> (i32, i32, i32) {
    %c0_i32 = arith.constant 0 : i32
    %c0_i32_0 = arith.constant 0 : i32
    %c0_i32_1 = arith.constant 0 : i32
    return %arg0, %c0_i32, %c0_i32_0 : i32, i32, i32
  }
}

module attributes {stable_mosaic.version = 11 : i64} {
  func.func @kernel(%arg0: i32, %arg1: i32, %arg2: memref<48x32xbf16, #tpu.memory_space<vmem>>, %arg3: memref<32x128xbf16, #tpu.memory_space<vmem>>, %arg4: memref<1x128xf32, #tpu.memory_space<vmem>>, %arg5: memref<48x128xf32, #tpu.memory_space<vmem>>, %arg6: memref<48x128xf32, #tpu.memory_space<vmem>>) attributes {dimension_semantics = [#tpu.dimension_semantics<parallel>, #tpu.dimension_semantics<parallel>], iteration_bounds = array<i64: 1, 1>, scalar_prefetch = 0 : i64, scratch_operands = 0 : i64, tpu.core_type = #tpu.core_type<tc>, window_params = [{transform_indices = @transform_0, window_bounds = array<i64: 48, 32>}, {transform_indices = @transform_1, window_bounds = array<i64: 32, 128>}, {transform_indices = @transform_2, window_bounds = array<i64: 1, 128>}, {transform_indices = @transform_3, window_bounds = array<i64: 48, 128>}, {transform_indices = @transform_4, window_bounds = array<i64: 48, 128>}]} {
    %c0 = arith.constant 0 : index
    %c0_0 = arith.constant 0 : index
    %0 = vector.load %arg2[%c0, %c0_0] : memref<48x32xbf16, #tpu.memory_space<vmem>>, vector<48x32xbf16>
    %c0_1 = arith.constant 0 : index
    %c0_2 = arith.constant 0 : index
    %1 = vector.load %arg3[%c0_1, %c0_2] : memref<32x128xbf16, #tpu.memory_space<vmem>>, vector<32x128xbf16>
    %cst = arith.constant dense<0.000000e+00> : vector<48x128xf32>
    %2 = tpu.matmul %0, %1, %cst {dimension_numbers = #tpu.dot_dimension_numbers<[1], [0], [0], [1], [0, 0, 1, 1], [], []>} : vector<48x32xbf16>, vector<32x128xbf16>, vector<48x128xf32> -> vector<48x128xf32>
    %c0_3 = arith.constant 0 : index
    %c0_4 = arith.constant 0 : index
    %3 = vector.load %arg4[%c0_3, %c0_4] : memref<1x128xf32, #tpu.memory_space<vmem>>, vector<1x128xf32>
    %4 = vector.broadcast %3 : vector<1x128xf32> to vector<48x128xf32>
    %5 = arith.addf %2, %4 : vector<48x128xf32>
    %c0_5 = arith.constant 0 : index
    %c0_6 = arith.constant 0 : index
    %6 = vector.load %arg5[%c0_5, %c0_6] : memref<48x128xf32, #tpu.memory_space<vmem>>, vector<48x128xf32>
    %7 = arith.addf %5, %6 : vector<48x128xf32>
    %c0_7 = arith.constant 0 : index
    %c0_8 = arith.constant 0 : index
    %8 = vector.load %arg6[%c0_7, %c0_8] : memref<48x128xf32, #tpu.memory_space<vmem>>, vector<48x128xf32>
    tpu.vector_store %arg6[%c0_7, %c0_8], %7 {strides = array<i32>} : memref<48x128xf32, #tpu.memory_space<vmem>>, vector<48x128xf32>,
    return
  }
  func.func @transform_0(%arg0: i32, %arg1: i32) -> (i32, i32) {
    %c0_i32 = arith.constant 0 : i32
    %c0_i32_0 = arith.constant 0 : i32
    return %arg0, %c0_i32 : i32, i32
  }
  func.func @transform_1(%arg0: i32, %arg1: i32) -> (i32, i32) {
    %c0_i32 = arith.constant 0 : i32
    %c0_i32_0 = arith.constant 0 : i32
    return %c0_i32, %arg1 : i32, i32
  }
  func.func @transform_2(%arg0: i32, %arg1: i32) -> (i32, i32) {
    %c0_i32 = arith.constant 0 : i32
    %c0_i32_0 = arith.constant 0 : i32
    return %c0_i32, %arg1 : i32, i32
  }
  func.func @transform_3(%arg0: i32, %arg1: i32) -> (i32, i32) {
    %c0_i32 = arith.constant 0 : i32
    return %arg0, %arg1 : i32, i32
  }
  func.func @transform_4(%arg0: i32, %arg1: i32) -> (i32, i32) {
    %c0_i32 = arith.constant 0 : i32
    return %arg0, %arg1 : i32, i32
  }
}

module attributes {stable_mosaic.version = 11 : i64} {
  func.func @kernel(%arg0: i32, %arg1: i32, %arg2: memref<48x32xf32, #tpu.memory_space<vmem>>, %arg3: memref<32x128xbf16, #tpu.memory_space<vmem>>, %arg4: memref<1x128xf32, #tpu.memory_space<vmem>>, %arg5: memref<1x32xf32, #tpu.memory_space<vmem>>, %arg6: memref<1x32xf32, #tpu.memory_space<vmem>>, %arg7: memref<48x128xbf16, #tpu.memory_space<vmem>>) attributes {dimension_semantics = [#tpu.dimension_semantics<parallel>, #tpu.dimension_semantics<parallel>], iteration_bounds = array<i64: 1, 1>, scalar_prefetch = 0 : i64, scratch_operands = 0 : i64, tpu.core_type = #tpu.core_type<tc>, window_params = [{transform_indices = @transform_0, window_bounds = array<i64: 48, 32>}, {transform_indices = @transform_1, window_bounds = array<i64: 32, 128>}, {transform_indices = @transform_2, window_bounds = array<i64: 1, 128>}, {pipeline_mode = #tpu.pipeline_mode<synchronous>, transform_indices = @transform_3, window_bounds = array<i64: 1, 32>}, {pipeline_mode = #tpu.pipeline_mode<synchronous>, transform_indices = @transform_4, window_bounds = array<i64: 1, 32>}, {transform_indices = @transform_5, window_bounds = array<i64: 48, 128>}]} {
    %c0 = arith.constant 0 : index
    %c0_0 = arith.constant 0 : index
    %0 = vector.load %arg2[%c0, %c0_0] : memref<48x32xf32, #tpu.memory_space<vmem>>, vector<48x32xf32>
    %cst = arith.constant dense<0.000000e+00> : vector<48xf32>
    %1 = vector.multi_reduction <add>, %0, %cst [1] : vector<48x32xf32> to vector<48xf32>
    %2 = vector.shape_cast %1 : vector<48xf32> to vector<48x1xf32>
    %cst_1 = arith.constant 3.200000e+01 : f32
    %3 = vector.broadcast %cst_1 : f32 to vector<48x1xf32>
    %4 = arith.divf %2, %3 : vector<48x1xf32>
    %5 = vector.broadcast %4 : vector<48x1xf32> to vector<48x32xf32>
    %6 = arith.subf %0, %5 : vector<48x32xf32>
    %7 = arith.mulf %6, %6 : vector<48x32xf32>
    %cst_2 = arith.constant dense<0.000000e+00> : vector<48xf32>
    %8 = vector.multi_reduction <add>, %7, %cst_2 [1] : vector<48x32xf32> to vector<48xf32>
    %9 = vector.shape_cast %8 : vector<48xf32> to vector<48x1xf32>
    %cst_3 = arith.constant 3.200000e+01 : f32
    %10 = vector.broadcast %cst_3 : f32 to vector<48x1xf32>
    %11 = arith.divf %9, %10 : vector<48x1xf32>
    %12 = vector.broadcast %4 : vector<48x1xf32> to vector<48x32xf32>
    %13 = arith.subf %0, %12 : vector<48x32xf32>
    %cst_4 = arith.constant 9.99999974E-6 : f32
    %14 = vector.broadcast %cst_4 : f32 to vector<48x1xf32>
    %15 = arith.addf %11, %14 : vector<48x1xf32>
    %16 = math.rsqrt %15 : vector<48x1xf32>
    %17 = vector.broadcast %16 : vector<48x1xf32> to vector<48x32xf32>
    %18 = arith.mulf %13, %17 : vector<48x32xf32>
    %c0_5 = arith.constant 0 : index
    %c0_6 = arith.constant 0 : index
    %19 = vector.load %arg5[%c0_5, %c0_6] : memref<1x32xf32, #tpu.memory_space<vmem>>, vector<1x32xf32>
    %20 = vector.broadcast %19 : vector<1x32xf32> to vector<48x32xf32>
    %21 = arith.mulf %18, %20 : vector<48x32xf32>
    %c0_7 = arith.constant 0 : index
    %c0_8 = arith.constant 0 : index
    %22 = vector.load %arg6[%c0_7, %c0_8] : memref<1x32xf32, #tpu.memory_space<vmem>>, vector<1x32xf32>
    %23 = vector.broadcast %22 : vector<1x32xf32> to vector<48x32xf32>
    %24 = arith.addf %21, %23 : vector<48x32xf32>
    %25 = arith.truncf %24 : vector<48x32xf32> to vector<48x32xbf16>
    %c0_9 = arith.constant 0 : index
    %c0_10 = arith.constant 0 : index
    %26 = vector.load %arg3[%c0_9, %c0_10] : memref<32x128xbf16, #tpu.memory_space<vmem>>, vector<32x128xbf16>
    %cst_11 = arith.constant dense<0.000000e+00> : vector<48x128xf32>
    %27 = tpu.matmul %25, %26, %cst_11 {dimension_numbers = #tpu.dot_dimension_numbers<[1], [0], [0], [1], [0, 0, 1, 1], [], []>} : vector<48x32xbf16>, vector<32x128xbf16>, vector<48x128xf32> -> vector<48x128xf32>
    %c0_12 = arith.constant 0 : index
    %c0_13 = arith.constant 0 : index
    %28 = vector.load %arg4[%c0_12, %c0_13] : memref<1x128xf32, #tpu.memory_space<vmem>>, vector<1x128xf32>
    %29 = vector.broadcast %28 : vector<1x128xf32> to vector<48x128xf32>
    %30 = arith.addf %27, %29 : vector<48x128xf32>
    %31 = arith.mulf %30, %30 : vector<48x128xf32>
    %32 = arith.mulf %30, %31 : vector<48x128xf32>
    %cst_14 = arith.constant 4.471500e-02 : f32
    %33 = vector.broadcast %cst_14 : f32 to vector<48x128xf32>
    %34 = arith.mulf %33, %32 : vector<48x128xf32>
    %35 = arith.addf %30, %34 : vector<48x128xf32>
    %cst_15 = arith.constant 0.797884583 : f32
    %36 = vector.broadcast %cst_15 : f32 to vector<48x128xf32>
    %37 = arith.mulf %36, %35 : vector<48x128xf32>
    %38 = math.tanh %37 : vector<48x128xf32>
    %cst_16 = arith.constant 1.000000e+00 : f32
    %39 = vector.broadcast %cst_16 : f32 to vector<48x128xf32>
    %40 = arith.addf %39, %38 : vector<48x128xf32>
    %cst_17 = arith.constant 5.000000e-01 : f32
    %41 = vector.broadcast %cst_17 : f32 to vector<48x128xf32>
    %42 = arith.mulf %41, %40 : vector<48x128xf32>
    %43 = arith.mulf %30, %42 : vector<48x128xf32>
    %44 = arith.truncf %43 : vector<48x128xf32> to vector<48x128xbf16>
    %c0_18 = arith.constant 0 : index
    %c0_19 = arith.constant 0 : index
    %45 = vector.load %arg7[%c0_18, %c0_19] : memref<48x128xbf16, #tpu.memory_space<vmem>>, vector<48x128xbf16>
    tpu.vector_store %arg7[%c0_18, %c0_19], %44 {strides = array<i32>} : memref<48x128xbf16, #tpu.memory_space<vmem>>, vector<48x128xbf16>,
    return
  }
  func.func @transform_0(%arg0: i32, %arg1: i32) -> (i32, i32) {
    %c0_i32 = arith.constant 0 : i32
    %c0_i32_0 = arith.constant 0 : i32
    return %arg0, %c0_i32 : i32, i32
  }
  func.func @transform_1(%arg0: i32, %arg1: i32) -> (i32, i32) {
    %c0_i32 = arith.constant 0 : i32
    %c0_i32_0 = arith.constant 0 : i32
    return %c0_i32, %arg1 : i32, i32
  }
  func.func @transform_2(%arg0: i32, %arg1: i32) -> (i32, i32) {
    %c0_i32 = arith.constant 0 : i32
    %c0_i32_0 = arith.constant 0 : i32
    return %c0_i32, %arg1 : i32, i32
  }
  func.func @transform_3(%arg0: i32, %arg1: i32) -> (i32, i32) {
    %c0_i32 = arith.constant 0 : i32
    %c0_i32_0 = arith.constant 0 : i32
    %c0_i32_1 = arith.constant 0 : i32
    return %c0_i32, %c0_i32_0 : i32, i32
  }
  func.func @transform_4(%arg0: i32, %arg1: i32) -> (i32, i32) {
    %c0_i32 = arith.constant 0 : i32
    %c0_i32_0 = arith.constant 0 : i32
    %c0_i32_1 = arith.constant 0 : i32
    return %c0_i32, %c0_i32_0 : i32, i32
  }
  func.func @transform_5(%arg0: i32, %arg1: i32) -> (i32, i32) {
    %c0_i32 = arith.constant 0 : i32
    return %arg0, %arg1 : i32, i32
  }
}

module attributes {stable_mosaic.version = 11 : i64} {
  func.func @_layernorm_kernel(%arg0: i32, %arg1: memref<8x32xf32, #tpu.memory_space<vmem>>, %arg2: memref<1x32xf32, #tpu.memory_space<vmem>>, %arg3: memref<1x32xf32, #tpu.memory_space<vmem>>, %arg4: memref<8x32xf32, #tpu.memory_space<vmem>>) attributes {dimension_semantics = [#tpu.dimension_semantics<parallel>], iteration_bounds = array<i64: 1>, scalar_prefetch = 0 : i64, scratch_operands = 0 : i64, tpu.core_type = #tpu.core_type<tc>, window_params = [{transform_indices = @transform_0, window_bounds = array<i64: 8, 32>}, {pipeline_mode = #tpu.pipeline_mode<synchronous>, transform_indices = @transform_1, window_bounds = array<i64: 1, 32>}, {pipeline_mode = #tpu.pipeline_mode<synchronous>, transform_indices = @transform_2, window_bounds = array<i64: 1, 32>}, {transform_indices = @transform_3, window_bounds = array<i64: 8, 32>}]} {
    %c0 = arith.constant 0 : index
    %c0_0 = arith.constant 0 : index
    %0 = vector.load %arg1[%c0, %c0_0] : memref<8x32xf32, #tpu.memory_space<vmem>>, vector<8x32xf32>
    %cst = arith.constant dense<0.000000e+00> : vector<8xf32>
    %1 = vector.multi_reduction <add>, %0, %cst [1] : vector<8x32xf32> to vector<8xf32>
    %2 = vector.shape_cast %1 : vector<8xf32> to vector<8x1xf32>
    %cst_1 = arith.constant 3.200000e+01 : f32
    %3 = vector.broadcast %cst_1 : f32 to vector<8x1xf32>
    %4 = arith.divf %2, %3 : vector<8x1xf32>
    %5 = vector.broadcast %4 : vector<8x1xf32> to vector<8x32xf32>
    %6 = arith.subf %0, %5 : vector<8x32xf32>
    %7 = arith.mulf %6, %6 : vector<8x32xf32>
    %cst_2 = arith.constant dense<0.000000e+00> : vector<8xf32>
    %8 = vector.multi_reduction <add>, %7, %cst_2 [1] : vector<8x32xf32> to vector<8xf32>
    %9 = vector.shape_cast %8 : vector<8xf32> to vector<8x1xf32>
    %cst_3 = arith.constant 3.200000e+01 : f32
    %10 = vector.broadcast %cst_3 : f32 to vector<8x1xf32>
    %11 = arith.divf %9, %10 : vector<8x1xf32>
    %12 = vector.broadcast %4 : vector<8x1xf32> to vector<8x32xf32>
    %13 = arith.subf %0, %12 : vector<8x32xf32>
    %cst_4 = arith.constant 9.99999974E-6 : f32
    %14 = vector.broadcast %cst_4 : f32 to vector<8x1xf32>
    %15 = arith.addf %11, %14 : vector<8x1xf32>
    %16 = math.rsqrt %15 : vector<8x1xf32>
    %17 = vector.broadcast %16 : vector<8x1xf32> to vector<8x32xf32>
    %18 = arith.mulf %13, %17 : vector<8x32xf32>
    %c0_5 = arith.constant 0 : index
    %c0_6 = arith.constant 0 : index
    %19 = vector.load %arg2[%c0_5, %c0_6] : memref<1x32xf32, #tpu.memory_space<vmem>>, vector<1x32xf32>
    %20 = vector.broadcast %19 : vector<1x32xf32> to vector<8x32xf32>
    %21 = arith.mulf %18, %20 : vector<8x32xf32>
    %c0_7 = arith.constant 0 : index
    %c0_8 = arith.constant 0 : index
    %22 = vector.load %arg3[%c0_7, %c0_8] : memref<1x32xf32, #tpu.memory_space<vmem>>, vector<1x32xf32>
    %23 = vector.broadcast %22 : vector<1x32xf32> to vector<8x32xf32>
    %24 = arith.addf %21, %23 : vector<8x32xf32>
    %c0_9 = arith.constant 0 : index
    %c0_10 = arith.constant 0 : index
    %25 = vector.load %arg4[%c0_9, %c0_10] : memref<8x32xf32, #tpu.memory_space<vmem>>, vector<8x32xf32>
    tpu.vector_store %arg4[%c0_9, %c0_10], %24 {strides = array<i32>} : memref<8x32xf32, #tpu.memory_space<vmem>>, vector<8x32xf32>,
    return
  }
  func.func @transform_0(%arg0: i32) -> (i32, i32) {
    %c0_i32 = arith.constant 0 : i32
    %c0_i32_0 = arith.constant 0 : i32
    return %arg0, %c0_i32 : i32, i32
  }
  func.func @transform_1(%arg0: i32) -> (i32, i32) {
    %c0_i32 = arith.constant 0 : i32
    %c0_i32_0 = arith.constant 0 : i32
    %c0_i32_1 = arith.constant 0 : i32
    return %c0_i32, %c0_i32_0 : i32, i32
  }
  func.func @transform_2(%arg0: i32) -> (i32, i32) {
    %c0_i32 = arith.constant 0 : i32
    %c0_i32_0 = arith.constant 0 : i32
    %c0_i32_1 = arith.constant 0 : i32
    return %c0_i32, %c0_i32_0 : i32, i32
  }
  func.func @transform_3(%arg0: i32) -> (i32, i32) {
    %c0_i32 = arith.constant 0 : i32
    %c0_i32_0 = arith.constant 0 : i32
    return %arg0, %c0_i32 : i32, i32
  }
}

module attributes {stable_mosaic.version = 11 : i64} {
  func.func @kernel(%arg0: i32, %arg1: i32, %arg2: memref<48x128xbf16, #tpu.memory_space<vmem>>, %arg3: memref<128x128xbf16, #tpu.memory_space<vmem>>, %arg4: memref<1x128xf32, #tpu.memory_space<vmem>>, %arg5: memref<48x128xf32, #tpu.memory_space<vmem>>, %arg6: memref<48x128xf32, #tpu.memory_space<vmem>>) attributes {dimension_semantics = [#tpu.dimension_semantics<parallel>, #tpu.dimension_semantics<parallel>], iteration_bounds = array<i64: 1, 1>, scalar_prefetch = 0 : i64, scratch_operands = 0 : i64, tpu.core_type = #tpu.core_type<tc>, window_params = [{transform_indices = @transform_0, window_bounds = array<i64: 48, 128>}, {transform_indices = @transform_1, window_bounds = array<i64: 128, 128>}, {transform_indices = @transform_2, window_bounds = array<i64: 1, 128>}, {transform_indices = @transform_3, window_bounds = array<i64: 48, 128>}, {transform_indices = @transform_4, window_bounds = array<i64: 48, 128>}]} {
    %c0 = arith.constant 0 : index
    %c0_0 = arith.constant 0 : index
    %0 = vector.load %arg2[%c0, %c0_0] : memref<48x128xbf16, #tpu.memory_space<vmem>>, vector<48x128xbf16>
    %c0_1 = arith.constant 0 : index
    %c0_2 = arith.constant 0 : index
    %1 = vector.load %arg3[%c0_1, %c0_2] : memref<128x128xbf16, #tpu.memory_space<vmem>>, vector<128x128xbf16>
    %cst = arith.constant dense<0.000000e+00> : vector<48x128xf32>
    %2 = tpu.matmul %0, %1, %cst {dimension_numbers = #tpu.dot_dimension_numbers<[1], [0], [0], [1], [0, 0, 1, 1], [], []>} : vector<48x128xbf16>, vector<128x128xbf16>, vector<48x128xf32> -> vector<48x128xf32>
    %c0_3 = arith.constant 0 : index
    %c0_4 = arith.constant 0 : index
    %3 = vector.load %arg4[%c0_3, %c0_4] : memref<1x128xf32, #tpu.memory_space<vmem>>, vector<1x128xf32>
    %4 = vector.broadcast %3 : vector<1x128xf32> to vector<48x128xf32>
    %5 = arith.addf %2, %4 : vector<48x128xf32>
    %c0_5 = arith.constant 0 : index
    %c0_6 = arith.constant 0 : index
    %6 = vector.load %arg5[%c0_5, %c0_6] : memref<48x128xf32, #tpu.memory_space<vmem>>, vector<48x128xf32>
    %7 = arith.addf %5, %6 : vector<48x128xf32>
    %c0_7 = arith.constant 0 : index
    %c0_8 = arith.constant 0 : index
    %8 = vector.load %arg6[%c0_7, %c0_8] : memref<48x128xf32, #tpu.memory_space<vmem>>, vector<48x128xf32>
    tpu.vector_store %arg6[%c0_7, %c0_8], %7 {strides = array<i32>} : memref<48x128xf32, #tpu.memory_space<vmem>>, vector<48x128xf32>,
    return
  }
  func.func @transform_0(%arg0: i32, %arg1: i32) -> (i32, i32) {
    %c0_i32 = arith.constant 0 : i32
    %c0_i32_0 = arith.constant 0 : i32
    return %arg0, %c0_i32 : i32, i32
  }
  func.func @transform_1(%arg0: i32, %arg1: i32) -> (i32, i32) {
    %c0_i32 = arith.constant 0 : i32
    %c0_i32_0 = arith.constant 0 : i32
    return %c0_i32, %arg1 : i32, i32
  }
  func.func @transform_2(%arg0: i32, %arg1: i32) -> (i32, i32) {
    %c0_i32 = arith.constant 0 : i32
    %c0_i32_0 = arith.constant 0 : i32
    return %c0_i32, %arg1 : i32, i32
  }
  func.func @transform_3(%arg0: i32, %arg1: i32) -> (i32, i32) {
    %c0_i32 = arith.constant 0 : i32
    return %arg0, %arg1 : i32, i32
  }
  func.func @transform_4(%arg0: i32, %arg1: i32) -> (i32, i32) {
    %c0_i32 = arith.constant 0 : i32
    return %arg0, %arg1 : i32, i32
  }
}

</mosaic_0001>

<llo_original>
// kernel: vit_forward.12
$region0: #{vit_forward.12}
  #allocation0 [shape = 'u32[]', space=smem, size = 0x4, offset = 0x4, fixed_abs, tag = 'smem constant byte address 0x4 - core index']
  #allocation1 [shape = 'u32[144,128]{1,0:T(1,128)}', space=vmem, size = 0x12000, scoped, tag = 'internal scratch']
  %s0 = inlined_call_operand.vmem [shape: f32[32,48], index: 0, kind: input, shape index: {}]
  %s1 = inlined_call_operand.vmem [shape: bf16[48,128], index: 1, kind: input, shape index: {}]
  %s2 = inlined_call_operand.vmem [shape: f32[1,128], index: 2, kind: input, shape index: {}]
  %s3 = inlined_call_operand.vmem [shape: f32[32,128], index: 3, kind: output, shape index: {}]
  %s4 = sld [smem:[#allocation0]]
  $region22: #{vit_forward.12} parent=0
    _
  %s6 = ssub.s32 1, %s4
  %s7 = scalar_select 0, %s6, %s4
  // Predicated region
  $region2: #{vit_forward.12} parent=0 // pred_check
    _
  $region3: #{vit_forward.12} parent=0 // pred_check_branch
    %9 = sbr.rel (0) target = $region5
  $region4: #{vit_forward.12} parent=0 // pred_region
    _
  $region5: #{vit_forward.12} parent=0 // pred_fallthru
    _
  // Predicated region
  $region6: #{vit_forward.12} parent=0 // pred_check
    _
  $region7: #{vit_forward.12} parent=0 // pred_check_branch
    %11 = sbr.rel (0) target = $region9
  $region8: #{vit_forward.12} parent=0 // pred_region
    _
  $region9: #{vit_forward.12} parent=0 // pred_fallthru
    _
  // Predicated region
  $region10: #{vit_forward.12} parent=0 // pred_check
    _
  $region11: #{vit_forward.12} parent=0 // pred_check_branch
    %13 = sbr.rel (0) target = $region13
  $region12: #{vit_forward.12} parent=0 // pred_region
    _
  $region13: #{vit_forward.12} parent=0 // pred_fallthru
    _
  %v15 = vld [vmem:[%s0] sm:$0xff]
  %v16 = vld [vmem:[%s0 + $0x8] sm:$0xff]
  %v17 = vld [vmem:[%s0 + $0x10] sm:$0xff]
  %v18 = vld [vmem:[%s0 + $0x18] sm:$0xff]
  %v19 = vpack.c.bf16 %v16, %v15
  %v20 = vpack.c.bf16 %v18, %v17
  %v21 = vld [vmem:[%s1] sm:$0xf]
  %v22 = vld [vmem:[%s1 + $0x4] sm:$0xf]
  %v23 = vld [vmem:[%s1 + $0x8] sm:$0xf]
  %v24 = vld [vmem:[%s1 + $0xc] sm:$0xf]
  %v25 = vld [vmem:[%s1 + $0x10] sm:$0xf]
  %v26 = vld [vmem:[%s1 + $0x14] sm:$0xf]
  %v27 = vld [vmem:[%s2] sm:$0x1]
  %v29 = vlaneseq
  %v30 = vshrl.u32 %v29, 7
  %v31 = vsub.s32 0, %v30
  %v32 = vrot.slane %v27, %v31
  %v40 = vunpack.c.l.b16 %v21
  %v41 = vunpack.c.l.b16 %v22
  %v42 = vunpack.c.l.b16 %v23
  %v43 = vunpack.c.l.b16 %v24
  %v44 = vunpack.c.l.b16 %v25
  %v45 = vunpack.c.l.b16 %v26
  %v46 = vpack.c.b16 %v41, %v40
  %v47 = vpack.c.b16 %v43, %v42
  %v48 = vpack.c.b16 %v45, %v44
  %vm52 = vcmask 392192
  %v54 = vsel %vm52, %v19, 0
  %v57 = vsel %vm52, %v20, 0
  %59 = vmatprep.subr.bf16.mxu0 0
  %60 = vmatpush1.bf16.msra.mxu0 0
  %61 = vmatprep.subr.bf16.mxu0 0
  %62 = vmatpush1.bf16.msra.mxu0 0
  %63 = vmatprep.subr.bf16.mxu0 0
  %64 = vmatpush1.bf16.msra.mxu0 0
  %65 = vmatprep.subr.bf16.mxu0 0
  %66 = vmatpush1.bf16.msra.mxu0 0
  %67 = vmatprep.subr.bf16.mxu0 0
  %68 = vmatpush1.bf16.msra.mxu0 0
  %69 = vmatprep.subr.bf16.mxu0 0
  %70 = vmatpush1.bf16.msra.mxu0 %v48
  %71 = vmatprep.subr.bf16.mxu0 0
  %72 = vmatpush1.bf16.msra.mxu0 %v47
  %73 = vmatprep.subr.bf16.mxu0 0
  %74 = vmatpush1.bf16.msra.mxu0 %v46
  %75 = vmatprep.subr.bf16.mxu0 0
  %76 = vmatpush2.bf16.msra.mxu0 0
  %77 = vmatprep.subr.bf16.mxu0 0
  %78 = vmatpush2.bf16.msra.mxu0 0
  %79 = vmatprep.subr.bf16.mxu0 0
  %80 = vmatpush2.bf16.msra.mxu0 0
  %81 = vmatprep.subr.bf16.mxu0 0
  %82 = vmatpush2.bf16.msra.mxu0 0
  %83 = vmatprep.subr.bf16.mxu0 0
  %84 = vmatpush2.bf16.msra.mxu0 0
  %85 = vmatprep.subr.bf16.mxu0 0
  %86 = vmatpush2.bf16.msra.mxu0 0
  %87 = vmatprep.subr.bf16.mxu0 0
  %88 = vmatpush2.bf16.msra.mxu0 0
  %89 = vmatprep.subr.bf16.mxu0 0
  %90 = vmatpush2.bf16.msra.mxu0 0
  %91 = vmatprep.mubr.bf16.mxu0 0
  %92 = vmatmul.mubr.bf16.gmra.mxu0 %v54
  %v93 = vpop.f32.mrf.mxu0
  %v94 = vadd.f32 %v32, %v93
  %v95 = vpop.f32.mrf.mxu0
  %v96 = vpop.f32.mrf.mxu0
  %v97 = vadd.f32 %v32, %v96
  %v98 = vpop.f32.mrf.mxu0
  %99 = vmatprep.mubr.bf16.mxu0 0
  %100 = vmatmul.mubr.bf16.gmra.mxu0 %v57
  %v101 = vpop.f32.mrf.mxu0
  %v102 = vadd.f32 %v32, %v101
  %v103 = vpop.f32.mrf.mxu0
  %v104 = vpop.f32.mrf.mxu0
  %v105 = vadd.f32 %v32, %v104
  %v106 = vpop.f32.mrf.mxu0
  %107 = vdwg.mxu0
  %108 = vst [vmem:[%s3] sm:$0xff] %v94
  %109 = vst [vmem:[%s3 + $0x8] sm:$0xff] %v97
  %110 = vst [vmem:[%s3 + $0x10] sm:$0xff] %v102
  %111 = vst [vmem:[%s3 + $0x18] sm:$0xff] %v105
  // Predicated region
  $region14: #{vit_forward.12} parent=0 // pred_check
    _
  $region15: #{vit_forward.12} parent=0 // pred_check_branch
    %113 = sbr.rel (0) target = $region17
  $region16: #{vit_forward.12} parent=0 // pred_region
    _
  $region17: #{vit_forward.12} parent=0 // pred_fallthru
    _
  // Predicated region
  $region18: #{vit_forward.12} parent=0 // pred_check
    _
  $region19: #{vit_forward.12} parent=0 // pred_check_branch
    %115 = sbr.rel (0) target = $region21
  $region20: #{vit_forward.12} parent=0 // pred_region
    _
  $region21: #{vit_forward.12} parent=0 // pred_fallthru
    _

// kernel: vit_forward.13
$region0: #{vit_forward.13}
  #allocation0 [shape = 'u32[]', space=smem, size = 0x4, offset = 0x4, fixed_abs, tag = 'smem constant byte address 0x4 - core index']
  #allocation1 [shape = 'u32[144,128]{1,0:T(1,128)}', space=vmem, size = 0x12000, scoped, tag = 'internal scratch']
  %s0 = inlined_call_operand.vmem [shape: f32[48,32], index: 0, kind: input, shape index: {}]
  %s1 = inlined_call_operand.vmem [shape: bf16[32,128], index: 1, kind: input, shape index: {}]
  %s2 = inlined_call_operand.vmem [shape: f32[1,128], index: 2, kind: input, shape index: {}]
  %s3 = inlined_call_operand.vmem [shape: f32[1,32], index: 3, kind: input, shape index: {}]
  %s4 = inlined_call_operand.vmem [shape: f32[1,32], index: 4, kind: input, shape index: {}]
  %s5 = inlined_call_operand.vmem [shape: bf16[48,128], index: 5, kind: output, shape index: {}]
  %s6 = sld [smem:[#allocation0]]
  $region30: #{vit_forward.13} parent=0
    _
  %s8 = ssub.s32 1, %s6
  %s9 = scalar_select 0, %s8, %s6
  // Predicated region
  $region2: #{vit_forward.13} parent=0 // pred_check
    _
  $region3: #{vit_forward.13} parent=0 // pred_check_branch
    %11 = sbr.rel (0) target = $region5
  $region4: #{vit_forward.13} parent=0 // pred_region
    _
  $region5: #{vit_forward.13} parent=0 // pred_fallthru
    _
  // Predicated region
  $region6: #{vit_forward.13} parent=0 // pred_check
    _
  $region7: #{vit_forward.13} parent=0 // pred_check_branch
    %13 = sbr.rel (0) target = $region9
  $region8: #{vit_forward.13} parent=0 // pred_region
    _
  $region9: #{vit_forward.13} parent=0 // pred_fallthru
    _
  // Predicated region
  $region10: #{vit_forward.13} parent=0 // pred_check
    _
  $region11: #{vit_forward.13} parent=0 // pred_check_branch
    %15 = sbr.rel (0) target = $region13
  $region12: #{vit_forward.13} parent=0 // pred_region
    _
  $region13: #{vit_forward.13} parent=0 // pred_fallthru
    _
  // Predicated region
  $region14: #{vit_forward.13} parent=0 // pred_check
    _
  $region15: #{vit_forward.13} parent=0 // pred_check_branch
    %17 = sbr.rel (0) target = $region17
  $region16: #{vit_forward.13} parent=0 // pred_region
    _
  $region17: #{vit_forward.13} parent=0 // pred_fallthru
    _
  // Predicated region
  $region18: #{vit_forward.13} parent=0 // pred_check
    _
  $region19: #{vit_forward.13} parent=0 // pred_check_branch
    %19 = sbr.rel (0) target = $region21
  $region20: #{vit_forward.13} parent=0 // pred_region
    _
  $region21: #{vit_forward.13} parent=0 // pred_fallthru
    _
  %v21 = vld [vmem:[%s0] sm:$0xff]
  %v22 = vld [vmem:[%s0 + $0x8] sm:$0xff]
  %v23 = vld [vmem:[%s0 + $0x10] sm:$0xff]
  %v24 = vld [vmem:[%s0 + $0x18] sm:$0xff]
  %v25 = vld [vmem:[%s0 + $0x20] sm:$0xff]
  %v26 = vld [vmem:[%s0 + $0x28] sm:$0xff]
  %vm27 = vcmask 261120
  %v28 = vsel %vm27, %v21, 0.0
  %29 = vadd.xlane.f32.xlu0 %v28
  %v30 = vpop.xlane.xlu0 %29
  %v31 = vsel %vm27, %v22, 0.0
  %32 = vadd.xlane.f32.xlu0 %v31
  %v33 = vpop.xlane.xlu0 %32
  %v34 = vsel %vm27, %v23, 0.0
  %35 = vadd.xlane.f32.xlu0 %v34
  %v36 = vpop.xlane.xlu0 %35
  %v37 = vsel %vm27, %v24, 0.0
  %38 = vadd.xlane.f32.xlu0 %v37
  %v39 = vpop.xlane.xlu0 %38
  %v40 = vsel %vm27, %v25, 0.0
  %41 = vadd.xlane.f32.xlu0 %v40
  %v42 = vpop.xlane.xlu0 %41
  %v43 = vsel %vm27, %v26, 0.0
  %44 = vadd.xlane.f32.xlu0 %v43
  %v45 = vpop.xlane.xlu0 %44
  %v46 = vrcp.pop 32.0
  %v47 = vmul.f32 %v30, %v46
  %v48 = vmul.f32 %v33, %v46
  %v49 = vmul.f32 %v36, %v46
  %v50 = vmul.f32 %v39, %v46
  %v51 = vmul.f32 %v42, %v46
  %v52 = vmul.f32 %v45, %v46
  %v53 = vsub.f32 %v21, %v47
  %v54 = vsub.f32 %v22, %v48
  %v55 = vsub.f32 %v23, %v49
  %v56 = vsub.f32 %v24, %v50
  %v57 = vsub.f32 %v25, %v51
  %v58 = vsub.f32 %v26, %v52
  %v59 = vmul.f32 %v53, %v53
  %v60 = vmul.f32 %v54, %v54
  %v61 = vmul.f32 %v55, %v55
  %v62 = vmul.f32 %v56, %v56
  %v63 = vmul.f32 %v57, %v57
  %v64 = vmul.f32 %v58, %v58
  %v65 = vsel %vm27, %v59, 0.0
  %66 = vadd.xlane.f32.xlu0 %v65
  %v67 = vpop.xlane.xlu0 %66
  %v68 = vsel %vm27, %v60, 0.0
  %69 = vadd.xlane.f32.xlu0 %v68
  %v70 = vpop.xlane.xlu0 %69
  %v71 = vsel %vm27, %v61, 0.0
  %72 = vadd.xlane.f32.xlu0 %v71
  %v73 = vpop.xlane.xlu0 %72
  %v74 = vsel %vm27, %v62, 0.0
  %75 = vadd.xlane.f32.xlu0 %v74
  %v76 = vpop.xlane.xlu0 %75
  %v77 = vsel %vm27, %v63, 0.0
  %78 = vadd.xlane.f32.xlu0 %v77
  %v79 = vpop.xlane.xlu0 %78
  %v80 = vsel %vm27, %v64, 0.0
  %81 = vadd.xlane.f32.xlu0 %v80
  %v82 = vpop.xlane.xlu0 %81
  %v83 = vmul.f32 %v67, %v46
  %v84 = vmul.f32 %v70, %v46
  %v85 = vmul.f32 %v73, %v46
  %v86 = vmul.f32 %v76, %v46
  %v87 = vmul.f32 %v79, %v46
  %v88 = vmul.f32 %v82, %v46
  %v89 = vadd.f32 %v83, 1e-05
  %v90 = vadd.f32 %v84, 1e-05
  %v91 = vadd.f32 %v85, 1e-05
  %v92 = vadd.f32 %v86, 1e-05
  %v93 = vadd.f32 %v87, 1e-05
  %v94 = vadd.f32 %v88, 1e-05
  %v95 = vrsqrt.pop %v89
  %v96 = vrsqrt.pop %v90
  %v97 = vrsqrt.pop %v91
  %v98 = vrsqrt.pop %v92
  %v99 = vrsqrt.pop %v93
  %v100 = vrsqrt.pop %v94
  %v101 = vmul.f32 %v53, %v95
  %v102 = vmul.f32 %v54, %v96
  %v103 = vmul.f32 %v55, %v97
  %v104 = vmul.f32 %v56, %v98
  %v105 = vmul.f32 %v57, %v99
  %v106 = vmul.f32 %v58, %v100
  %v107 = vld [vmem:[%s3] sm:$0x1]
  %v109 = vlaneseq
  %v110 = vshrl.u32 %v109, 7
  %v111 = vsub.s32 0, %v110
  %v112 = vrot.slane %v107, %v111
  %v114 = vmul.f32 %v101, %v112
  %v115 = vmul.f32 %v102, %v112
  %v116 = vmul.f32 %v103, %v112
  %v117 = vmul.f32 %v104, %v112
  %v118 = vmul.f32 %v105, %v112
  %v119 = vmul.f32 %v106, %v112
  %v120 = vld [vmem:[%s4] sm:$0x1]
  %v122 = vlaneseq
  %v123 = vshrl.u32 %v122, 7
  %v124 = vsub.s32 0, %v123
  %v125 = vrot.slane %v120, %v124
  %v127 = vadd.f32 %v114, %v125
  %v128 = vadd.f32 %v115, %v125
  %v129 = vadd.f32 %v116, %v125
  %v130 = vadd.f32 %v117, %v125
  %v131 = vadd.f32 %v118, %v125
  %v132 = vadd.f32 %v119, %v125
  %v133 = vpack.c.bf16 %v128, %v127
  %v134 = vpack.c.bf16 %v130, %v129
  %v135 = vpack.c.bf16 %v132, %v131
  %v136 = vld [vmem:[%s1] sm:$0xf]
  %v137 = vld [vmem:[%s1 + $0x4] sm:$0xf]
  %v138 = vld [vmem:[%s1 + $0x8] sm:$0xf]
  %v139 = vld [vmem:[%s1 + $0xc] sm:$0xf]
  %v140 = vld [vmem:[%s2] sm:$0x1]
  %v142 = vlaneseq
  %v143 = vshrl.u32 %v142, 7
  %v144 = vsub.s32 0, %v143
  %v145 = vrot.slane %v140, %v144
  %v151 = vunpack.c.l.b16 %v136
  %v152 = vunpack.c.l.b16 %v137
  %v153 = vunpack.c.l.b16 %v138
  %v154 = vunpack.c.l.b16 %v139
  %v155 = vpack.c.b16 %v152, %v151
  %v156 = vpack.c.b16 %v154, %v153
  %v160 = vsel %vm27, %v133, 0
  %v163 = vsel %vm27, %v134, 0
  %v166 = vsel %vm27, %v135, 0
  %168 = vmatprep.subr.bf16.mxu0 0
  %169 = vmatpush1.bf16.msra.mxu0 0
  %170 = vmatprep.subr.bf16.mxu0 0
  %171 = vmatpush1.bf16.msra.mxu0 0
  %172 = vmatprep.subr.bf16.mxu0 0
  %173 = vmatpush1.bf16.msra.mxu0 0
  %174 = vmatprep.subr.bf16.mxu0 0
  %175 = vmatpush1.bf16.msra.mxu0 0
  %176 = vmatprep.subr.bf16.mxu0 0
  %177 = vmatpush1.bf16.msra.mxu0 0
  %178 = vmatprep.subr.bf16.mxu0 0
  %179 = vmatpush1.bf16.msra.mxu0 0
  %180 = vmatprep.subr.bf16.mxu0 0
  %181 = vmatpush1.bf16.msra.mxu0 %v156
  %182 = vmatprep.subr.bf16.mxu0 0
  %183 = vmatpush1.bf16.msra.mxu0 %v155
  %184 = vmatprep.subr.bf16.mxu0 0
  %185 = vmatpush2.bf16.msra.mxu0 0
  %186 = vmatprep.subr.bf16.mxu0 0
  %187 = vmatpush2.bf16.msra.mxu0 0
  %188 = vmatprep.subr.bf16.mxu0 0
  %189 = vmatpush2.bf16.msra.mxu0 0
  %190 = vmatprep.subr.bf16.mxu0 0
  %191 = vmatpush2.bf16.msra.mxu0 0
  %192 = vmatprep.subr.bf16.mxu0 0
  %193 = vmatpush2.bf16.msra.mxu0 0
  %194 = vmatprep.subr.bf16.mxu0 0
  %195 = vmatpush2.bf16.msra.mxu0 0
  %196 = vmatprep.subr.bf16.mxu0 0
  %197 = vmatpush2.bf16.msra.mxu0 0
  %198 = vmatprep.subr.bf16.mxu0 0
  %199 = vmatpush2.bf16.msra.mxu0 0
  %200 = vmatprep.mubr.bf16.mxu0 0
  %201 = vmatmul.mubr.bf16.gmra.mxu0 %v160
  %v202 = vpop.f32.mrf.mxu0
  %v203 = vadd.f32 %v145, %v202
  %v204 = vpop.f32.mrf.mxu0
  %v205 = vpop.f32.mrf.mxu0
  %v206 = vadd.f32 %v145, %v205
  %v207 = vpop.f32.mrf.mxu0
  %208 = vmatprep.mubr.bf16.mxu0 0
  %209 = vmatmul.mubr.bf16.gmra.mxu0 %v163
  %v210 = vpop.f32.mrf.mxu0
  %v211 = vadd.f32 %v145, %v210
  %v212 = vpop.f32.mrf.mxu0
  %v213 = vpop.f32.mrf.mxu0
  %v214 = vadd.f32 %v145, %v213
  %v215 = vpop.f32.mrf.mxu0
  %216 = vmatprep.mubr.bf16.mxu0 0
  %217 = vmatmul.mubr.bf16.gmra.mxu0 %v166
  %v218 = vpop.f32.mrf.mxu0
  %v219 = vadd.f32 %v145, %v218
  %v220 = vpop.f32.mrf.mxu0
  %v221 = vpop.f32.mrf.mxu0
  %v222 = vadd.f32 %v145, %v221
  %v223 = vpop.f32.mrf.mxu0
  %224 = vdwg.mxu0
  %v225 = vpack.c.bf16 %v206, %v203
  %v226 = vpack.c.bf16 %v214, %v211
  %v227 = vpack.c.bf16 %v222, %v219
  %v231 = vunpack.c.l.b16 %v225
  %v232 = vunpack.c.h.b16 %v225
  %v233 = vunpack.c.l.b16 %v226
  %v234 = vunpack.c.h.b16 %v226
  %v235 = vunpack.c.l.b16 %v227
  %v236 = vunpack.c.h.b16 %v227
  %v237 = vpack.c.b16 %v231, %v231
  %v238 = vpack.c.b16 %v232, %v232
  %v239 = vpack.c.b16 %v233, %v233
  %v240 = vpack.c.b16 %v234, %v234
  %v241 = vpack.c.b16 %v235, %v235
  %v242 = vpack.c.b16 %v236, %v236
  %249 = vst [vmem:[%s5] sm:$0xf] %v237
  %250 = vst [vmem:[%s5 + $0x4] sm:$0xf] %v238
  %251 = vst [vmem:[%s5 + $0x8] sm:$0xf] %v239
  %252 = vst [vmem:[%s5 + $0xc] sm:$0xf] %v240
  %253 = vst [vmem:[%s5 + $0x10] sm:$0xf] %v241
  %254 = vst [vmem:[%s5 + $0x14] sm:$0xf] %v242
  // Predicated region
  $region22: #{vit_forward.13} parent=0 // pred_check
    _
  $region23: #{vit_forward.13} parent=0 // pred_check_branch
    %256 = sbr.rel (0) target = $region25
  $region24: #{vit_forward.13} parent=0 // pred_region
    _
  $region25: #{vit_forward.13} parent=0 // pred_fallthru
    _
  // Predicated region
  $region26: #{vit_forward.13} parent=0 // pred_check
    _
  $region27: #{vit_forward.13} parent=0 // pred_check_branch
    %258 = sbr.rel (0) target = $region29
  $region28: #{vit_forward.13} parent=0 // pred_region
    _
  $region29: #{vit_forward.13} parent=0 // pred_fallthru
    _

// kernel: vit_forward.15
$region0: #{vit_forward.15}
  #allocation0 [shape = 'u32[]', space=smem, size = 0x4, offset = 0x4, fixed_abs, tag = 'smem constant byte address 0x4 - core index']
  #allocation1 [shape = 'u32[144,128]{1,0:T(1,128)}', space=vmem, size = 0x12000, scoped, tag = 'internal scratch']
  %s0 = inlined_call_operand.vmem [shape: bf16[48,32], index: 0, kind: input, shape index: {}]
  %s1 = inlined_call_operand.vmem [shape: bf16[32,128], index: 1, kind: input, shape index: {}]
  %s2 = inlined_call_operand.vmem [shape: f32[1,128], index: 2, kind: input, shape index: {}]
  %s3 = inlined_call_operand.vmem [shape: f32[48,128], index: 3, kind: input, shape index: {}]
  %s4 = inlined_call_operand.vmem [shape: f32[48,128], index: 4, kind: output, shape index: {}]
  %s5 = sld [smem:[#allocation0]]
  $region26: #{vit_forward.15} parent=0
    _
  %s7 = ssub.s32 1, %s5
  %s8 = scalar_select 0, %s7, %s5
  // Predicated region
  $region2: #{vit_forward.15} parent=0 // pred_check
    _
  $region3: #{vit_forward.15} parent=0 // pred_check_branch
    %10 = sbr.rel (0) target = $region5
  $region4: #{vit_forward.15} parent=0 // pred_region
    _
  $region5: #{vit_forward.15} parent=0 // pred_fallthru
    _
  // Predicated region
  $region6: #{vit_forward.15} parent=0 // pred_check
    _
  $region7: #{vit_forward.15} parent=0 // pred_check_branch
    %12 = sbr.rel (0) target = $region9
  $region8: #{vit_forward.15} parent=0 // pred_region
    _
  $region9: #{vit_forward.15} parent=0 // pred_fallthru
    _
  // Predicated region
  $region10: #{vit_forward.15} parent=0 // pred_check
    _
  $region11: #{vit_forward.15} parent=0 // pred_check_branch
    %14 = sbr.rel (0) target = $region13
  $region12: #{vit_forward.15} parent=0 // pred_region
    _
  $region13: #{vit_forward.15} parent=0 // pred_fallthru
    _
  // Predicated region
  $region14: #{vit_forward.15} parent=0 // pred_check
    _
  $region15: #{vit_forward.15} parent=0 // pred_check_branch
    %16 = sbr.rel (0) target = $region17
  $region16: #{vit_forward.15} parent=0 // pred_region
    _
  $region17: #{vit_forward.15} parent=0 // pred_fallthru
    _
  %v18 = vld [vmem:[%s0] sm:$0xf]
  %v19 = vld [vmem:[%s0 + $0x4] sm:$0xf]
  %v20 = vld [vmem:[%s0 + $0x8] sm:$0xf]
  %v21 = vld [vmem:[%s0 + $0xc] sm:$0xf]
  %v22 = vld [vmem:[%s0 + $0x10] sm:$0xf]
  %v23 = vld [vmem:[%s0 + $0x14] sm:$0xf]
  %v24 = vld [vmem:[%s1] sm:$0xf]
  %v25 = vld [vmem:[%s1 + $0x4] sm:$0xf]
  %v26 = vld [vmem:[%s1 + $0x8] sm:$0xf]
  %v27 = vld [vmem:[%s1 + $0xc] sm:$0xf]
  %v28 = vld [vmem:[%s2] sm:$0x1]
  %v30 = vlaneseq
  %v31 = vshrl.u32 %v30, 7
  %v32 = vsub.s32 0, %v31
  %v33 = vrot.slane %v28, %v32
  %v41 = vunpack.c.l.b16 %v18
  %v42 = vunpack.c.l.b16 %v19
  %v43 = vunpack.c.l.b16 %v20
  %v44 = vunpack.c.l.b16 %v21
  %v45 = vunpack.c.l.b16 %v22
  %v46 = vunpack.c.l.b16 %v23
  %v47 = vpack.c.b16 %v42, %v41
  %v48 = vpack.c.b16 %v44, %v43
  %v49 = vpack.c.b16 %v46, %v45
  %v54 = vunpack.c.l.b16 %v24
  %v55 = vunpack.c.l.b16 %v25
  %v56 = vunpack.c.l.b16 %v26
  %v57 = vunpack.c.l.b16 %v27
  %v58 = vpack.c.b16 %v55, %v54
  %v59 = vpack.c.b16 %v57, %v56
  %vm62 = vcmask 261120
  %v64 = vsel %vm62, %v47, 0
  %v67 = vsel %vm62, %v48, 0
  %v70 = vsel %vm62, %v49, 0
  %72 = vmatprep.subr.bf16.mxu0 0
  %73 = vmatpush1.bf16.msra.mxu0 0
  %74 = vmatprep.subr.bf16.mxu0 0
  %75 = vmatpush1.bf16.msra.mxu0 0
  %76 = vmatprep.subr.bf16.mxu0 0
  %77 = vmatpush1.bf16.msra.mxu0 0
  %78 = vmatprep.subr.bf16.mxu0 0
  %79 = vmatpush1.bf16.msra.mxu0 0
  %80 = vmatprep.subr.bf16.mxu0 0
  %81 = vmatpush1.bf16.msra.mxu0 0
  %82 = vmatprep.subr.bf16.mxu0 0
  %83 = vmatpush1.bf16.msra.mxu0 0
  %84 = vmatprep.subr.bf16.mxu0 0
  %85 = vmatpush1.bf16.msra.mxu0 %v59
  %86 = vmatprep.subr.bf16.mxu0 0
  %87 = vmatpush1.bf16.msra.mxu0 %v58
  %88 = vmatprep.subr.bf16.mxu0 0
  %89 = vmatpush2.bf16.msra.mxu0 0
  %90 = vmatprep.subr.bf16.mxu0 0
  %91 = vmatpush2.bf16.msra.mxu0 0
  %92 = vmatprep.subr.bf16.mxu0 0
  %93 = vmatpush2.bf16.msra.mxu0 0
  %94 = vmatprep.subr.bf16.mxu0 0
  %95 = vmatpush2.bf16.msra.mxu0 0
  %96 = vmatprep.subr.bf16.mxu0 0
  %97 = vmatpush2.bf16.msra.mxu0 0
  %98 = vmatprep.subr.bf16.mxu0 0
  %99 = vmatpush2.bf16.msra.mxu0 0
  %100 = vmatprep.subr.bf16.mxu0 0
  %101 = vmatpush2.bf16.msra.mxu0 0
  %102 = vmatprep.subr.bf16.mxu0 0
  %103 = vmatpush2.bf16.msra.mxu0 0
  %104 = vmatprep.mubr.bf16.mxu0 0
  %105 = vmatmul.mubr.bf16.gmra.mxu0 %v64
  %v106 = vpop.f32.mrf.mxu0
  %v107 = vadd.f32 %v33, %v106
  %v108 = vpop.f32.mrf.mxu0
  %v109 = vpop.f32.mrf.mxu0
  %v110 = vadd.f32 %v33, %v109
  %v111 = vpop.f32.mrf.mxu0
  %112 = vmatprep.mubr.bf16.mxu0 0
  %113 = vmatmul.mubr.bf16.gmra.mxu0 %v67
  %v114 = vpop.f32.mrf.mxu0
  %v115 = vadd.f32 %v33, %v114
  %v116 = vpop.f32.mrf.mxu0
  %v117 = vpop.f32.mrf.mxu0
  %v118 = vadd.f32 %v33, %v117
  %v119 = vpop.f32.mrf.mxu0
  %120 = vmatprep.mubr.bf16.mxu0 0
  %121 = vmatmul.mubr.bf16.gmra.mxu0 %v70
  %v122 = vpop.f32.mrf.mxu0
  %v123 = vadd.f32 %v33, %v122
  %v124 = vpop.f32.mrf.mxu0
  %v125 = vpop.f32.mrf.mxu0
  %v126 = vadd.f32 %v33, %v125
  %v127 = vpop.f32.mrf.mxu0
  %128 = vdwg.mxu0
  %v129 = vld [vmem:[%s3] sm:$0xff]
  %v130 = vld [vmem:[%s3 + $0x8] sm:$0xff]
  %v131 = vld [vmem:[%s3 + $0x10] sm:$0xff]
  %v132 = vld [vmem:[%s3 + $0x18] sm:$0xff]
  %v133 = vld [vmem:[%s3 + $0x20] sm:$0xff]
  %v134 = vld [vmem:[%s3 + $0x28] sm:$0xff]
  %v135 = vadd.f32 %v107, %v129
  %v136 = vadd.f32 %v110, %v130
  %v137 = vadd.f32 %v115, %v131
  %v138 = vadd.f32 %v118, %v132
  %v139 = vadd.f32 %v123, %v133
  %v140 = vadd.f32 %v126, %v134
  %141 = vst [vmem:[%s4] sm:$0xff] %v135
  %142 = vst [vmem:[%s4 + $0x8] sm:$0xff] %v136
  %143 = vst [vmem:[%s4 + $0x10] sm:$0xff] %v137
  %144 = vst [vmem:[%s4 + $0x18] sm:$0xff] %v138
  %145 = vst [vmem:[%s4 + $0x20] sm:$0xff] %v139
  %146 = vst [vmem:[%s4 + $0x28] sm:$0xff] %v140
  // Predicated region
  $region18: #{vit_forward.15} parent=0 // pred_check
    _
  $region19: #{vit_forward.15} parent=0 // pred_check_branch
    %148 = sbr.rel (0) target = $region21
  $region20: #{vit_forward.15} parent=0 // pred_region
    _
  $region21: #{vit_forward.15} parent=0 // pred_fallthru
    _
  // Predicated region
  $region22: #{vit_forward.15} parent=0 // pred_check
    _
  $region23: #{vit_forward.15} parent=0 // pred_check_branch
    %150 = sbr.rel (0) target = $region25
  $region24: #{vit_forward.15} parent=0 // pred_region
    _
  $region25: #{vit_forward.15} parent=0 // pred_fallthru
    _

// kernel: vit_forward.14
$region0: #{vit_forward.14}
  #allocation0 [shape = 'u32[]', space=smem, size = 0x4, offset = 0x4, fixed_abs, tag = 'smem constant byte address 0x4 - core index']
  #allocation1 [shape = 'u32[144,128]{1,0:T(1,128)}', space=vmem, size = 0x12000, scoped, tag = 'internal scratch']
  %s0 = inlined_call_operand.vmem [shape: bf16[2,32,96], index: 0, kind: input, shape index: {}]
  %s1 = inlined_call_operand.vmem [shape: bf16[2,32,32], index: 1, kind: output, shape index: {}]
  %s2 = sld [smem:[#allocation0]]
  $region37: #{vit_forward.14} parent=0
    _
  %s4 = ssub.s32 1, %s2
  %s5 = scalar_select 0, %s4, %s2
  loop: start=0, step=1, limit=4
  $region2: #{vit_forward.14} parent=0 // loop_pre_header
    _
  $region3: #{vit_forward.14} parent=0 // loop_header
    %s7 = sphi 0, %s11
    %p8 = scmp.ge.s32.totalorder %s7, 4
    %s17 = sphi 0, %s19
    %s20 = sphi 0, %s17
    %s21 = sphi 0, %s20
    %s37 = sphi 0, %s21
    %s43 = sphi 0, %s45
    %s46 = sphi 0, %s43
    %s47 = sphi 0, %s46
    %s63 = sphi 0, %s47
  $region4: #{vit_forward.14} parent=0 // loop_header_branch
    %10 = sbr.rel (%p8) target = $region8
  $region5: #{vit_forward.14} parent=0 // loop_body
    %s12 = ssub.s32 %s7, 1
    %s13 = ssub.s32 %s7, 2
    %s14 = sadd.s32 %s7, 1
    %s15 = ssub.s32 %s7, %s14
    %p16 = scmp.eq.s32.totalorder %s15, 0
    %s18 = sadd.s32 %s17, 1
    %s19 = scalar_select %p16, %s17, %s18
    %p22 = pneg %p16
    %p23 = scmp.eq.s32.totalorder %s7, 1
    %p24 = por %p22, %p23
    %p25 = scmp.ne.s32.totalorder %s17, %s20
    %p26 = scmp.eq.s32.totalorder %s7, 0
    %p27 = por %p25, %p26
    %p28 = scmp.ne.s32.totalorder %s17, %s20
    %p29 = scmp.eq.s32.totalorder %s12, 1
    %p30 = por %p28, %p29
    %p31 = scmp.ne.s32.totalorder %s20, %s21
    %p32 = scmp.eq.s32.totalorder %s12, 0
    %p33 = por %p31, %p32
    %p34 = scmp.ne.s32.totalorder %s20, %s21
    %p35 = scmp.eq.s32.totalorder %s13, 1
    %p36 = por %p34, %p35
    %p38 = scmp.ne.s32.totalorder %s21, %s37
    %p39 = scmp.eq.s32.totalorder %s13, 0
    %p40 = por %p38, %p39
    %s41 = ssub.s32 %s7, %s14
    %p42 = scmp.eq.s32.totalorder %s41, 0
    %s44 = sadd.s32 %s43, 1
    %s45 = scalar_select %p42, %s43, %s44
    %p48 = pneg %p42
    %p49 = scmp.eq.s32.totalorder %s7, 1
    %p50 = por %p48, %p49
    %p51 = scmp.ne.s32.totalorder %s43, %s46
    %p52 = scmp.eq.s32.totalorder %s7, 0
    %p53 = por %p51, %p52
    %p54 = scmp.ne.s32.totalorder %s43, %s46
    %p55 = scmp.eq.s32.totalorder %s12, 1
    %p56 = por %p54, %p55
    %p57 = scmp.ne.s32.totalorder %s46, %s47
    %p58 = scmp.eq.s32.totalorder %s12, 0
    %p59 = por %p57, %p58
    %p60 = scmp.ne.s32.totalorder %s46, %s47
    %p61 = scmp.eq.s32.totalorder %s13, 1
    %p62 = por %p60, %p61
    %p64 = scmp.ne.s32.totalorder %s47, %s63
    %p65 = scmp.eq.s32.totalorder %s13, 0
    %p66 = por %p64, %p65
    %p67 = scmp.le.s32.totalorder 1, %s7
    %p68 = scmp.lt.s32.totalorder %s7, 3
    %p69 = pnand %p67, %p68
    %p70 = pneg %p69
    // Predicated region
    $region9: #{vit_forward.14} parent=5 // pred_check
      _
    $region10: #{vit_forward.14} parent=5 // pred_check_branch
      %72 = sbr.rel (%p69) target = $region12
    $region11: #{vit_forward.14} parent=5 // pred_region
      %s73 = ssub.s32 %s7, 1
    $region12: #{vit_forward.14} parent=5 // pred_fallthru
      _
    %p74 = scmp.lt.s32.totalorder %s7, 2
    // Predicated region
    $region13: #{vit_forward.14} parent=5 // pred_check
      %p75 = pneg %p74
    $region14: #{vit_forward.14} parent=5 // pred_check_branch
      %77 = sbr.rel (%p75) target = $region16
    $region15: #{vit_forward.14} parent=5 // pred_region
      // Predicated region
      $region17: #{vit_forward.14} parent=15 // pred_check
        %p78 = pneg %p27
      $region18: #{vit_forward.14} parent=15 // pred_check_branch
        %80 = sbr.rel (%p78) target = $region20
      $region19: #{vit_forward.14} parent=15 // pred_region
        %p81 = scmp.lt.s32.totalorder %s7, 1
        %s82 = scalar_select %p81, %s7, 1
        %s83 = smul.addr %s82, 4
        %s84 = smul.addr %s83, 4
        %s85 = scalar_lea.vmem %s0, %s84
      $region20: #{vit_forward.14} parent=15 // pred_fallthru
        _
    $region16: #{vit_forward.14} parent=5 // pred_fallthru
      _
    %p86 = scmp.le.s32.totalorder 1, %s7
    %p87 = scmp.lt.s32.totalorder %s7, 3
    %p88 = pnand %p86, %p87
    %p89 = pneg %p88
    // Predicated region
    $region21: #{vit_forward.14} parent=5 // pred_check
      _
    $region22: #{vit_forward.14} parent=5 // pred_check_branch
      %91 = sbr.rel (%p88) target = $region24
    $region23: #{vit_forward.14} parent=5 // pred_region
      %s92 = ssub.s32 %s7, 1
      %p93 = scmp.lt.s32.totalorder %s12, 1
      %s94 = scalar_select %p93, %s12, 1
      %s95 = smul.addr %s94, 4
      %s96 = smul.addr %s95, 4
      %s97 = scalar_lea.vmem %s0, %s96
      %p98 = pneg %p33
      %p99 = pneg %p30
      %p100 = pneg %p59
      %p101 = pneg %p56
      %p102 = scmp.lt.s32.totalorder %s12, 1
      %s103 = scalar_select %p102, %s12, 1
      %s104 = smul.addr %s103, 4
      %s105 = smul.addr %s104, 4
      %s106 = scalar_lea.vmem %s1, %s105
      %p107 = scmp.lt.s32.totalorder %s12, 1
      %s108 = scalar_select %p107, %s12, 1
      %s109 = smul.addr %s108, 4
      %s110 = smul.addr %s109, 4
      %s111 = scalar_lea.vmem %s0, %s110
      %p112 = scmp.lt.s32.totalorder %s12, 1
      %s113 = scalar_select %p112, %s12, 1
      %s114 = smul.addr %s113, 4
      %s115 = smul.addr %s114, 4
      %s116 = scalar_lea.vmem %s1, %s115
      %v118 = vlaneseq
      %v119 = vand.u32 %v118, 127
      %vm120 = vcmp.lt.s32.totalorder %v119, 17
      %v121 = vld [vmem:[%s111] sm:$0xf]
      %v122 = vld [vmem:[%s111 + $0x4] sm:$0xf]
      %v123 = vld [vmem:[%s111 + $0x8] sm:$0xf]
      %v124 = vld [vmem:[%s111 + $0xc] sm:$0xf]
      %v129 = vunpack.c.l.b16 %v121
      %v130 = vunpack.c.l.b16 %v122
      %v131 = vunpack.c.l.b16 %v123
      %v132 = vunpack.c.l.b16 %v124
      %v133 = vpack.c.b16 %v130, %v129
      %v134 = vpack.c.b16 %v132, %v131
      %135 = vrot.lane.b32.xlu0 %v133, 96
      %v136 = vpop.permute.xlu0 %135
      %137 = vrot.lane.b32.xlu0 %v134, 96
      %v138 = vpop.permute.xlu0 %137
      %vm139 = vcmask 64512
      %v141 = vsel %vm139, %v133, 0
      %v144 = vsel %vm139, %v134, 0
      %v147 = vsel %vm139, %v136, 0
      %v150 = vsel %vm139, %v138, 0
      %152 = vmatprep.subr.bf16.mxu0 0
      %153 = vmatpush1.bf16.xpose.msra.mxu0 0
      %154 = vmatprep.subr.bf16.mxu0 0
      %155 = vmatpush1.bf16.xpose.msra.mxu0 0
      %156 = vmatprep.subr.bf16.mxu0 0
      %157 = vmatpush1.bf16.xpose.msra.mxu0 0
      %158 = vmatprep.subr.bf16.mxu0 0
      %159 = vmatpush1.bf16.xpose.msra.mxu0 0
      %160 = vmatprep.subr.bf16.mxu0 0
      %161 = vmatpush1.bf16.xpose.msra.mxu0 0
      %162 = vmatprep.subr.bf16.mxu0 0
      %163 = vmatpush1.bf16.xpose.msra.mxu0 0
      %164 = vmatprep.subr.bf16.mxu0 0
      %165 = vmatpush1.bf16.xpose.msra.mxu0 %v150
      %166 = vmatprep.subr.bf16.mxu0 0
      %167 = vmatpush1.bf16.xpose.msra.mxu0 %v147
      %168 = vmatprep.subr.bf16.mxu0 0
      %169 = vmatpush2.bf16.xpose.msra.mxu0 0
      %170 = vmatprep.subr.bf16.mxu0 0
      %171 = vmatpush2.bf16.xpose.msra.mxu0 0
      %172 = vmatprep.subr.bf16.mxu0 0
      %173 = vmatpush2.bf16.xpose.msra.mxu0 0
      %174 = vmatprep.subr.bf16.mxu0 0
      %175 = vmatpush2.bf16.xpose.msra.mxu0 0
      %176 = vmatprep.subr.bf16.mxu0 0
      %177 = vmatpush2.bf16.xpose.msra.mxu0 0
      %178 = vmatprep.subr.bf16.mxu0 0
      %179 = vmatpush2.bf16.xpose.msra.mxu0 0
      %180 = vmatprep.subr.bf16.mxu0 0
      %181 = vmatpush2.bf16.xpose.msra.mxu0 0
      %182 = vmatprep.subr.bf16.mxu0 0
      %183 = vmatpush2.bf16.xpose.msra.mxu0 0
      %184 = vmatprep.mubr.bf16.mxu0 0
      %185 = vmatmul.mubr.bf16.gmra.mxu0 %v141
      %v186 = vpop.f32.mrf.mxu0
      %v187 = vadd.f32 0.0, %v186
      %v188 = vpop.f32.mrf.mxu0
      %v189 = vpop.f32.mrf.mxu0
      %v190 = vadd.f32 0.0, %v189
      %v191 = vpop.f32.mrf.mxu0
      %192 = vmatprep.mubr.bf16.mxu0 0
      %193 = vmatmul.mubr.bf16.gmra.mxu0 %v144
      %v194 = vpop.f32.mrf.mxu0
      %v195 = vadd.f32 0.0, %v194
      %v196 = vpop.f32.mrf.mxu0
      %v197 = vpop.f32.mrf.mxu0
      %v198 = vadd.f32 0.0, %v197
      %v199 = vpop.f32.mrf.mxu0
      %200 = vdwg.mxu0
      %v201 = vmul.f32 %v187, 0.35355338
      %v202 = vmul.f32 %v190, 0.35355338
      %v203 = vmul.f32 %v195, 0.35355338
      %v204 = vmul.f32 %v198, 0.35355338
      %v205 = vsel %vm120, %v201, -1e+30
      %v206 = vsel %vm120, %v202, -1e+30
      %v207 = vsel %vm120, %v203, -1e+30
      %v208 = vsel %vm120, %v204, -1e+30
      %vm209 = vcmask 261120
      %v210 = vsel %vm209, %v205, -inf
      %211 = vmax.xlane.f32.xlu0 %v210
      %v212 = vpop.xlane.xlu0 %211
      %v213 = vsel %vm209, %v206, -inf
      %214 = vmax.xlane.f32.xlu0 %v213
      %v215 = vpop.xlane.xlu0 %214
      %v216 = vsel %vm209, %v207, -inf
      %217 = vmax.xlane.f32.xlu0 %v216
      %v218 = vpop.xlane.xlu0 %217
      %v219 = vsel %vm209, %v208, -inf
      %220 = vmax.xlane.f32.xlu0 %v219
      %v221 = vpop.xlane.xlu0 %220
      %v222 = vsub.f32 %v205, %v212
      %v223 = vsub.f32 %v206, %v215
      %v224 = vsub.f32 %v207, %v218
      %v225 = vsub.f32 %v208, %v221
      %v226 = vmul.f32 %v222, 1.442695
      %v227 = vpow.pop %v226
      %v228 = vmul.f32 %v223, 1.442695
      %v229 = vpow.pop %v228
      %v230 = vmul.f32 %v224, 1.442695
      %v231 = vpow.pop %v230
      %v232 = vmul.f32 %v225, 1.442695
      %v233 = vpow.pop %v232
      %v234 = vsel %vm209, %v227, 0.0
      %235 = vadd.xlane.f32.xlu0 %v234
      %v236 = vpop.xlane.xlu0 %235
      %v237 = vsel %vm209, %v229, 0.0
      %238 = vadd.xlane.f32.xlu0 %v237
      %v239 = vpop.xlane.xlu0 %238
      %v240 = vsel %vm209, %v231, 0.0
      %241 = vadd.xlane.f32.xlu0 %v240
      %v242 = vpop.xlane.xlu0 %241
      %v243 = vsel %vm209, %v233, 0.0
      %244 = vadd.xlane.f32.xlu0 %v243
      %v245 = vpop.xlane.xlu0 %244
      %v246 = vrcp.pop %v236
      %v247 = vrcp.pop %v239
      %v248 = vrcp.pop %v242
      %v249 = vrcp.pop %v245
      %v250 = vmul.f32 %v227, %v246
      %v251 = vmul.f32 %v229, %v247
      %v252 = vmul.f32 %v231, %v248
      %v253 = vmul.f32 %v233, %v249
      %v254 = vpack.c.bf16 %v251, %v250
      %v255 = vpack.c.bf16 %v253, %v252
      %256 = vrot.lane.b32.xlu0 %v133, 64
      %v257 = vpop.permute.xlu0 %256
      %258 = vrot.lane.b32.xlu0 %v134, 64
      %v259 = vpop.permute.xlu0 %258
      %v263 = vsel %vm209, %v254, 0
      %v266 = vsel %vm209, %v255, 0
      %268 = vmatprep.subr.bf16.mxu0 0
      %269 = vmatpush1.bf16.msra.mxu0 0
      %270 = vmatprep.subr.bf16.mxu0 0
      %271 = vmatpush1.bf16.msra.mxu0 0
      %272 = vmatprep.subr.bf16.mxu0 0
      %273 = vmatpush1.bf16.msra.mxu0 0
      %274 = vmatprep.subr.bf16.mxu0 0
      %275 = vmatpush1.bf16.msra.mxu0 0
      %276 = vmatprep.subr.bf16.mxu0 0
      %277 = vmatpush1.bf16.msra.mxu0 0
      %278 = vmatprep.subr.bf16.mxu0 0
      %279 = vmatpush1.bf16.msra.mxu0 0
      %280 = vmatprep.subr.bf16.mxu0 0
      %281 = vmatpush1.bf16.msra.mxu0 %v259
      %282 = vmatprep.subr.bf16.mxu0 0
      %283 = vmatpush1.bf16.msra.mxu0 %v257
      %284 = vmatprep.subr.bf16.mxu0 0
      %285 = vmatpush2.bf16.msra.mxu0 0
      %286 = vmatprep.subr.bf16.mxu0 0
      %287 = vmatpush2.bf16.msra.mxu0 0
      %288 = vmatprep.subr.bf16.mxu0 0
      %289 = vmatpush2.bf16.msra.mxu0 0
      %290 = vmatprep.subr.bf16.mxu0 0
      %291 = vmatpush2.bf16.msra.mxu0 0
      %292 = vmatprep.subr.bf16.mxu0 0
      %293 = vmatpush2.bf16.msra.mxu0 0
      %294 = vmatprep.subr.bf16.mxu0 0
      %295 = vmatpush2.bf16.msra.mxu0 0
      %296 = vmatprep.subr.bf16.mxu0 0
      %297 = vmatpush2.bf16.msra.mxu0 0
      %298 = vmatprep.subr.bf16.mxu0 0
      %299 = vmatpush2.bf16.msra.mxu0 0
      %300 = vmatprep.mubr.bf16.mxu0 0
      %301 = vmatmul.mubr.bf16.gmra.mxu0 %v263
      %v302 = vpop.f32.mrf.mxu0
      %v303 = vadd.f32 0.0, %v302
      %v304 = vpop.f32.mrf.mxu0
      %v305 = vpop.f32.mrf.mxu0
      %v306 = vadd.f32 0.0, %v305
      %v307 = vpop.f32.mrf.mxu0
      %308 = vmatprep.mubr.bf16.mxu0 0
      %309 = vmatmul.mubr.bf16.gmra.mxu0 %v266
      %v310 = vpop.f32.mrf.mxu0
      %v311 = vadd.f32 0.0, %v310
      %v312 = vpop.f32.mrf.mxu0
      %v313 = vpop.f32.mrf.mxu0
      %v314 = vadd.f32 0.0, %v313
      %v315 = vpop.f32.mrf.mxu0
      %316 = vdwg.mxu0
      %317 = vrot.lane.b32.xlu0 %v133, 120
      %v318 = vpop.permute.xlu0 %317
      %319 = vrot.lane.b32.xlu0 %v134, 120
      %v320 = vpop.permute.xlu0 %319
      %321 = vrot.lane.b32.xlu0 %v133, 88
      %v322 = vpop.permute.xlu0 %321
      %323 = vrot.lane.b32.xlu0 %v134, 88
      %v324 = vpop.permute.xlu0 %323
      %v326 = vsel %vm139, %v318, 0
      %v329 = vsel %vm139, %v320, 0
      %v332 = vsel %vm139, %v322, 0
      %v335 = vsel %vm139, %v324, 0
      %337 = vmatprep.subr.bf16.mxu0 0
      %338 = vmatpush1.bf16.xpose.msra.mxu0 0
      %339 = vmatprep.subr.bf16.mxu0 0
      %340 = vmatpush1.bf16.xpose.msra.mxu0 0
      %341 = vmatprep.subr.bf16.mxu0 0
      %342 = vmatpush1.bf16.xpose.msra.mxu0 0
      %343 = vmatprep.subr.bf16.mxu0 0
      %344 = vmatpush1.bf16.xpose.msra.mxu0 0
      %345 = vmatprep.subr.bf16.mxu0 0
      %346 = vmatpush1.bf16.xpose.msra.mxu0 0
      %347 = vmatprep.subr.bf16.mxu0 0
      %348 = vmatpush1.bf16.xpose.msra.mxu0 0
      %349 = vmatprep.subr.bf16.mxu0 0
      %350 = vmatpush1.bf16.xpose.msra.mxu0 %v335
      %351 = vmatprep.subr.bf16.mxu0 0
      %352 = vmatpush1.bf16.xpose.msra.mxu0 %v332
      %353 = vmatprep.subr.bf16.mxu0 0
      %354 = vmatpush2.bf16.xpose.msra.mxu0 0
      %355 = vmatprep.subr.bf16.mxu0 0
      %356 = vmatpush2.bf16.xpose.msra.mxu0 0
      %357 = vmatprep.subr.bf16.mxu0 0
      %358 = vmatpush2.bf16.xpose.msra.mxu0 0
      %359 = vmatprep.subr.bf16.mxu0 0
      %360 = vmatpush2.bf16.xpose.msra.mxu0 0
      %361 = vmatprep.subr.bf16.mxu0 0
      %362 = vmatpush2.bf16.xpose.msra.mxu0 0
      %363 = vmatprep.subr.bf16.mxu0 0
      %364 = vmatpush2.bf16.xpose.msra.mxu0 0
      %365 = vmatprep.subr.bf16.mxu0 0
      %366 = vmatpush2.bf16.xpose.msra.mxu0 0
      %367 = vmatprep.subr.bf16.mxu0 0
      %368 = vmatpush2.bf16.xpose.msra.mxu0 0
      %369 = vmatprep.mubr.bf16.mxu0 0
      %370 = vmatmul.mubr.bf16.gmra.mxu0 %v326
      %v371 = vpop.f32.mrf.mxu0
      %v372 = vadd.f32 0.0, %v371
      %v373 = vpop.f32.mrf.mxu0
      %v374 = vpop.f32.mrf.mxu0
      %v375 = vadd.f32 0.0, %v374
      %v376 = vpop.f32.mrf.mxu0
      %377 = vmatprep.mubr.bf16.mxu0 0
      %378 = vmatmul.mubr.bf16.gmra.mxu0 %v329
      %v379 = vpop.f32.mrf.mxu0
      %v380 = vadd.f32 0.0, %v379
      %v381 = vpop.f32.mrf.mxu0
      %v382 = vpop.f32.mrf.mxu0
      %v383 = vadd.f32 0.0, %v382
      %v384 = vpop.f32.mrf.mxu0
      %385 = vdwg.mxu0
      %v386 = vmul.f32 %v372, 0.35355338
      %v387 = vmul.f32 %v375, 0.35355338
      %v388 = vmul.f32 %v380, 0.35355338
      %v389 = vmul.f32 %v383, 0.35355338
      %v390 = vsel %vm120, %v386, -1e+30
      %v391 = vsel %vm120, %v387, -1e+30
      %v392 = vsel %vm120, %v388, -1e+30
      %v393 = vsel %vm120, %v389, -1e+30
      %v394 = vsel %vm209, %v390, -inf
      %395 = vmax.xlane.f32.xlu0 %v394
      %v396 = vpop.xlane.xlu0 %395
      %v397 = vsel %vm209, %v391, -inf
      %398 = vmax.xlane.f32.xlu0 %v397
      %v399 = vpop.xlane.xlu0 %398
      %v400 = vsel %vm209, %v392, -inf
      %401 = vmax.xlane.f32.xlu0 %v400
      %v402 = vpop.xlane.xlu0 %401
      %v403 = vsel %vm209, %v393, -inf
      %404 = vmax.xlane.f32.xlu0 %v403
      %v405 = vpop.xlane.xlu0 %404
      %v406 = vsub.f32 %v390, %v396
      %v407 = vsub.f32 %v391, %v399
      %v408 = vsub.f32 %v392, %v402
      %v409 = vsub.f32 %v393, %v405
      %v410 = vmul.f32 %v406, 1.442695
      %v411 = vpow.pop %v410
      %v412 = vmul.f32 %v407, 1.442695
      %v413 = vpow.pop %v412
      %v414 = vmul.f32 %v408, 1.442695
      %v415 = vpow.pop %v414
      %v416 = vmul.f32 %v409, 1.442695
      %v417 = vpow.pop %v416
      %v418 = vsel %vm209, %v411, 0.0
      %419 = vadd.xlane.f32.xlu0 %v418
      %v420 = vpop.xlane.xlu0 %419
      %v421 = vsel %vm209, %v413, 0.0
      %422 = vadd.xlane.f32.xlu0 %v421
      %v423 = vpop.xlane.xlu0 %422
      %v424 = vsel %vm209, %v415, 0.0
      %425 = vadd.xlane.f32.xlu0 %v424
      %v426 = vpop.xlane.xlu0 %425
      %v427 = vsel %vm209, %v417, 0.0
      %428 = vadd.xlane.f32.xlu0 %v427
      %v429 = vpop.xlane.xlu0 %428
      %v430 = vrcp.pop %v420
      %v431 = vrcp.pop %v423
      %v432 = vrcp.pop %v426
      %v433 = vrcp.pop %v429
      %v434 = vmul.f32 %v411, %v430
      %v435 = vmul.f32 %v413, %v431
      %v436 = vmul.f32 %v415, %v432
      %v437 = vmul.f32 %v417, %v433
      %v438 = vpack.c.bf16 %v435, %v434
      %v439 = vpack.c.bf16 %v437, %v436
      %440 = vrot.lane.b32.xlu0 %v133, 56
      %v441 = vpop.permute.xlu0 %440
      %442 = vrot.lane.b32.xlu0 %v134, 56
      %v443 = vpop.permute.xlu0 %442
      %v447 = vsel %vm209, %v438, 0
      %v450 = vsel %vm209, %v439, 0
      %452 = vmatprep.subr.bf16.mxu0 0
      %453 = vmatpush1.bf16.msra.mxu0 0
      %454 = vmatprep.subr.bf16.mxu0 0
      %455 = vmatpush1.bf16.msra.mxu0 0
      %456 = vmatprep.subr.bf16.mxu0 0
      %457 = vmatpush1.bf16.msra.mxu0 0
      %458 = vmatprep.subr.bf16.mxu0 0
      %459 = vmatpush1.bf16.msra.mxu0 0
      %460 = vmatprep.subr.bf16.mxu0 0
      %461 = vmatpush1.bf16.msra.mxu0 0
      %462 = vmatprep.subr.bf16.mxu0 0
      %463 = vmatpush1.bf16.msra.mxu0 0
      %464 = vmatprep.subr.bf16.mxu0 0
      %465 = vmatpush1.bf16.msra.mxu0 %v443
      %466 = vmatprep.subr.bf16.mxu0 0
      %467 = vmatpush1.bf16.msra.mxu0 %v441
      %468 = vmatprep.subr.bf16.mxu0 0
      %469 = vmatpush2.bf16.msra.mxu0 0
      %470 = vmatprep.subr.bf16.mxu0 0
      %471 = vmatpush2.bf16.msra.mxu0 0
      %472 = vmatprep.subr.bf16.mxu0 0
      %473 = vmatpush2.bf16.msra.mxu0 0
      %474 = vmatprep.subr.bf16.mxu0 0
      %475 = vmatpush2.bf16.msra.mxu0 0
      %476 = vmatprep.subr.bf16.mxu0 0
      %477 = vmatpush2.bf16.msra.mxu0 0
      %478 = vmatprep.subr.bf16.mxu0 0
      %479 = vmatpush2.bf16.msra.mxu0 0
      %480 = vmatprep.subr.bf16.mxu0 0
      %481 = vmatpush2.bf16.msra.mxu0 0
      %482 = vmatprep.subr.bf16.mxu0 0
      %483 = vmatpush2.bf16.msra.mxu0 0
      %484 = vmatprep.mubr.bf16.mxu0 0
      %485 = vmatmul.mubr.bf16.gmra.mxu0 %v447
      %v486 = vpop.f32.mrf.mxu0
      %v487 = vadd.f32 0.0, %v486
      %v488 = vpop.f32.mrf.mxu0
      %v489 = vpop.f32.mrf.mxu0
      %v490 = vadd.f32 0.0, %v489
      %v491 = vpop.f32.mrf.mxu0
      %492 = vmatprep.mubr.bf16.mxu0 0
      %493 = vmatmul.mubr.bf16.gmra.mxu0 %v450
      %v494 = vpop.f32.mrf.mxu0
      %v495 = vadd.f32 0.0, %v494
      %v496 = vpop.f32.mrf.mxu0
      %v497 = vpop.f32.mrf.mxu0
      %v498 = vadd.f32 0.0, %v497
      %v499 = vpop.f32.mrf.mxu0
      %500 = vdwg.mxu0
      %501 = vrot.lane.b32.xlu0 %v133, 112
      %v502 = vpop.permute.xlu0 %501
      %503 = vrot.lane.b32.xlu0 %v134, 112
      %v504 = vpop.permute.xlu0 %503
      %505 = vrot.lane.b32.xlu0 %v133, 80
      %v506 = vpop.permute.xlu0 %505
      %507 = vrot.lane.b32.xlu0 %v134, 80
      %v508 = vpop.permute.xlu0 %507
      %v510 = vsel %vm139, %v502, 0
      %v513 = vsel %vm139, %v504, 0
      %v516 = vsel %vm139, %v506, 0
      %v519 = vsel %vm139, %v508, 0
      %521 = vmatprep.subr.bf16.mxu0 0
      %522 = vmatpush1.bf16.xpose.msra.mxu0 0
      %523 = vmatprep.subr.bf16.mxu0 0
      %524 = vmatpush1.bf16.xpose.msra.mxu0 0
      %525 = vmatprep.subr.bf16.mxu0 0
      %526 = vmatpush1.bf16.xpose.msra.mxu0 0
      %527 = vmatprep.subr.bf16.mxu0 0
      %528 = vmatpush1.bf16.xpose.msra.mxu0 0
      %529 = vmatprep.subr.bf16.mxu0 0
      %530 = vmatpush1.bf16.xpose.msra.mxu0 0
      %531 = vmatprep.subr.bf16.mxu0 0
      %532 = vmatpush1.bf16.xpose.msra.mxu0 0
      %533 = vmatprep.subr.bf16.mxu0 0
      %534 = vmatpush1.bf16.xpose.msra.mxu0 %v519
      %535 = vmatprep.subr.bf16.mxu0 0
      %536 = vmatpush1.bf16.xpose.msra.mxu0 %v516
      %537 = vmatprep.subr.bf16.mxu0 0
      %538 = vmatpush2.bf16.xpose.msra.mxu0 0
      %539 = vmatprep.subr.bf16.mxu0 0
      %540 = vmatpush2.bf16.xpose.msra.mxu0 0
      %541 = vmatprep.subr.bf16.mxu0 0
      %542 = vmatpush2.bf16.xpose.msra.mxu0 0
      %543 = vmatprep.subr.bf16.mxu0 0
      %544 = vmatpush2.bf16.xpose.msra.mxu0 0
      %545 = vmatprep.subr.bf16.mxu0 0
      %546 = vmatpush2.bf16.xpose.msra.mxu0 0
      %547 = vmatprep.subr.bf16.mxu0 0
      %548 = vmatpush2.bf16.xpose.msra.mxu0 0
      %549 = vmatprep.subr.bf16.mxu0 0
      %550 = vmatpush2.bf16.xpose.msra.mxu0 0
      %551 = vmatprep.subr.bf16.mxu0 0
      %552 = vmatpush2.bf16.xpose.msra.mxu0 0
      %553 = vmatprep.mubr.bf16.mxu0 0
      %554 = vmatmul.mubr.bf16.gmra.mxu0 %v510
      %v555 = vpop.f32.mrf.mxu0
      %v556 = vadd.f32 0.0, %v555
      %v557 = vpop.f32.mrf.mxu0
      %v558 = vpop.f32.mrf.mxu0
      %v559 = vadd.f32 0.0, %v558
      %v560 = vpop.f32.mrf.mxu0
      %561 = vmatprep.mubr.bf16.mxu0 0
      %562 = vmatmul.mubr.bf16.gmra.mxu0 %v513
      %v563 = vpop.f32.mrf.mxu0
      %v564 = vadd.f32 0.0, %v563
      %v565 = vpop.f32.mrf.mxu0
      %v566 = vpop.f32.mrf.mxu0
      %v567 = vadd.f32 0.0, %v566
      %v568 = vpop.f32.mrf.mxu0
      %569 = vdwg.mxu0
      %v570 = vmul.f32 %v556, 0.35355338
      %v571 = vmul.f32 %v559, 0.35355338
      %v572 = vmul.f32 %v564, 0.35355338
      %v573 = vmul.f32 %v567, 0.35355338
      %v574 = vsel %vm120, %v570, -1e+30
      %v575 = vsel %vm120, %v571, -1e+30
      %v576 = vsel %vm120, %v572, -1e+30
      %v577 = vsel %vm120, %v573, -1e+30
      %v578 = vsel %vm209, %v574, -inf
      %579 = vmax.xlane.f32.xlu0 %v578
      %v580 = vpop.xlane.xlu0 %579
      %v581 = vsel %vm209, %v575, -inf
      %582 = vmax.xlane.f32.xlu0 %v581
      %v583 = vpop.xlane.xlu0 %582
      %v584 = vsel %vm209, %v576, -inf
      %585 = vmax.xlane.f32.xlu0 %v584
      %v586 = vpop.xlane.xlu0 %585
      %v587 = vsel %vm209, %v577, -inf
      %588 = vmax.xlane.f32.xlu0 %v587
      %v589 = vpop.xlane.xlu0 %588
      %v590 = vsub.f32 %v574, %v580
      %v591 = vsub.f32 %v575, %v583
      %v592 = vsub.f32 %v576, %v586
      %v593 = vsub.f32 %v577, %v589
      %v594 = vmul.f32 %v590, 1.442695
      %v595 = vpow.pop %v594
      %v596 = vmul.f32 %v591, 1.442695
      %v597 = vpow.pop %v596
      %v598 = vmul.f32 %v592, 1.442695
      %v599 = vpow.pop %v598
      %v600 = vmul.f32 %v593, 1.442695
      %v601 = vpow.pop %v600
      %v602 = vsel %vm209, %v595, 0.0
      %603 = vadd.xlane.f32.xlu0 %v602
      %v604 = vpop.xlane.xlu0 %603
      %v605 = vsel %vm209, %v597, 0.0
      %606 = vadd.xlane.f32.xlu0 %v605
      %v607 = vpop.xlane.xlu0 %606
      %v608 = vsel %vm209, %v599, 0.0
      %609 = vadd.xlane.f32.xlu0 %v608
      %v610 = vpop.xlane.xlu0 %609
      %v611 = vsel %vm209, %v601, 0.0
      %612 = vadd.xlane.f32.xlu0 %v611
      %v613 = vpop.xlane.xlu0 %612
      %v614 = vrcp.pop %v604
      %v615 = vrcp.pop %v607
      %v616 = vrcp.pop %v610
      %v617 = vrcp.pop %v613
      %v618 = vmul.f32 %v595, %v614
      %v619 = vmul.f32 %v597, %v615
      %v620 = vmul.f32 %v599, %v616
      %v621 = vmul.f32 %v601, %v617
      %v622 = vpack.c.bf16 %v619, %v618
      %v623 = vpack.c.bf16 %v621, %v620
      %624 = vrot.lane.b32.xlu0 %v133, 48
      %v625 = vpop.permute.xlu0 %624
      %626 = vrot.lane.b32.xlu0 %v134, 48
      %v627 = vpop.permute.xlu0 %626
      %v631 = vsel %vm209, %v622, 0
      %v634 = vsel %vm209, %v623, 0
      %636 = vmatprep.subr.bf16.mxu0 0
      %637 = vmatpush1.bf16.msra.mxu0 0
      %638 = vmatprep.subr.bf16.mxu0 0
      %639 = vmatpush1.bf16.msra.mxu0 0
      %640 = vmatprep.subr.bf16.mxu0 0
      %641 = vmatpush1.bf16.msra.mxu0 0
      %642 = vmatprep.subr.bf16.mxu0 0
      %643 = vmatpush1.bf16.msra.mxu0 0
      %644 = vmatprep.subr.bf16.mxu0 0
      %645 = vmatpush1.bf16.msra.mxu0 0
      %646 = vmatprep.subr.bf16.mxu0 0
      %647 = vmatpush1.bf16.msra.mxu0 0
      %648 = vmatprep.subr.bf16.mxu0 0
      %649 = vmatpush1.bf16.msra.mxu0 %v627
      %650 = vmatprep.subr.bf16.mxu0 0
      %651 = vmatpush1.bf16.msra.mxu0 %v625
      %652 = vmatprep.subr.bf16.mxu0 0
      %653 = vmatpush2.bf16.msra.mxu0 0
      %654 = vmatprep.subr.bf16.mxu0 0
      %655 = vmatpush2.bf16.msra.mxu0 0
      %656 = vmatprep.subr.bf16.mxu0 0
      %657 = vmatpush2.bf16.msra.mxu0 0
      %658 = vmatprep.subr.bf16.mxu0 0
      %659 = vmatpush2.bf16.msra.mxu0 0
      %660 = vmatprep.subr.bf16.mxu0 0
      %661 = vmatpush2.bf16.msra.mxu0 0
      %662 = vmatprep.subr.bf16.mxu0 0
      %663 = vmatpush2.bf16.msra.mxu0 0
      %664 = vmatprep.subr.bf16.mxu0 0
      %665 = vmatpush2.bf16.msra.mxu0 0
      %666 = vmatprep.subr.bf16.mxu0 0
      %667 = vmatpush2.bf16.msra.mxu0 0
      %668 = vmatprep.mubr.bf16.mxu0 0
      %669 = vmatmul.mubr.bf16.gmra.mxu0 %v631
      %v670 = vpop.f32.mrf.mxu0
      %v671 = vadd.f32 0.0, %v670
      %v672 = vpop.f32.mrf.mxu0
      %v673 = vpop.f32.mrf.mxu0
      %v674 = vadd.f32 0.0, %v673
      %v675 = vpop.f32.mrf.mxu0
      %676 = vmatprep.mubr.bf16.mxu0 0
      %677 = vmatmul.mubr.bf16.gmra.mxu0 %v634
      %v678 = vpop.f32.mrf.mxu0
      %v679 = vadd.f32 0.0, %v678
      %v680 = vpop.f32.mrf.mxu0
      %v681 = vpop.f32.mrf.mxu0
      %v682 = vadd.f32 0.0, %v681
      %v683 = vpop.f32.mrf.mxu0
      %684 = vdwg.mxu0
      %685 = vrot.lane.b32.xlu0 %v133, 104
      %v686 = vpop.permute.xlu0 %685
      %687 = vrot.lane.b32.xlu0 %v134, 104
      %v688 = vpop.permute.xlu0 %687
      %689 = vrot.lane.b32.xlu0 %v133, 72
      %v690 = vpop.permute.xlu0 %689
      %691 = vrot.lane.b32.xlu0 %v134, 72
      %v692 = vpop.permute.xlu0 %691
      %v694 = vsel %vm139, %v686, 0
      %v697 = vsel %vm139, %v688, 0
      %v700 = vsel %vm139, %v690, 0
      %v703 = vsel %vm139, %v692, 0
      %705 = vmatprep.subr.bf16.mxu0 0
      %706 = vmatpush1.bf16.xpose.msra.mxu0 0
      %707 = vmatprep.subr.bf16.mxu0 0
      %708 = vmatpush1.bf16.xpose.msra.mxu0 0
      %709 = vmatprep.subr.bf16.mxu0 0
      %710 = vmatpush1.bf16.xpose.msra.mxu0 0
      %711 = vmatprep.subr.bf16.mxu0 0
      %712 = vmatpush1.bf16.xpose.msra.mxu0 0
      %713 = vmatprep.subr.bf16.mxu0 0
      %714 = vmatpush1.bf16.xpose.msra.mxu0 0
      %715 = vmatprep.subr.bf16.mxu0 0
      %716 = vmatpush1.bf16.xpose.msra.mxu0 0
      %717 = vmatprep.subr.bf16.mxu0 0
      %718 = vmatpush1.bf16.xpose.msra.mxu0 %v703
      %719 = vmatprep.subr.bf16.mxu0 0
      %720 = vmatpush1.bf16.xpose.msra.mxu0 %v700
      %721 = vmatprep.subr.bf16.mxu0 0
      %722 = vmatpush2.bf16.xpose.msra.mxu0 0
      %723 = vmatprep.subr.bf16.mxu0 0
      %724 = vmatpush2.bf16.xpose.msra.mxu0 0
      %725 = vmatprep.subr.bf16.mxu0 0
      %726 = vmatpush2.bf16.xpose.msra.mxu0 0
      %727 = vmatprep.subr.bf16.mxu0 0
      %728 = vmatpush2.bf16.xpose.msra.mxu0 0
      %729 = vmatprep.subr.bf16.mxu0 0
      %730 = vmatpush2.bf16.xpose.msra.mxu0 0
      %731 = vmatprep.subr.bf16.mxu0 0
      %732 = vmatpush2.bf16.xpose.msra.mxu0 0
      %733 = vmatprep.subr.bf16.mxu0 0
      %734 = vmatpush2.bf16.xpose.msra.mxu0 0
      %735 = vmatprep.subr.bf16.mxu0 0
      %736 = vmatpush2.bf16.xpose.msra.mxu0 0
      %737 = vmatprep.mubr.bf16.mxu0 0
      %738 = vmatmul.mubr.bf16.gmra.mxu0 %v694
      %v739 = vpop.f32.mrf.mxu0
      %v740 = vadd.f32 0.0, %v739
      %v741 = vpop.f32.mrf.mxu0
      %v742 = vpop.f32.mrf.mxu0
      %v743 = vadd.f32 0.0, %v742
      %v744 = vpop.f32.mrf.mxu0
      %745 = vmatprep.mubr.bf16.mxu0 0
      %746 = vmatmul.mubr.bf16.gmra.mxu0 %v697
      %v747 = vpop.f32.mrf.mxu0
      %v748 = vadd.f32 0.0, %v747
      %v749 = vpop.f32.mrf.mxu0
      %v750 = vpop.f32.mrf.mxu0
      %v751 = vadd.f32 0.0, %v750
      %v752 = vpop.f32.mrf.mxu0
      %753 = vdwg.mxu0
      %v754 = vmul.f32 %v740, 0.35355338
      %v755 = vmul.f32 %v743, 0.35355338
      %v756 = vmul.f32 %v748, 0.35355338
      %v757 = vmul.f32 %v751, 0.35355338
      %v758 = vsel %vm120, %v754, -1e+30
      %v759 = vsel %vm120, %v755, -1e+30
      %v760 = vsel %vm120, %v756, -1e+30
      %v761 = vsel %vm120, %v757, -1e+30
      %v762 = vsel %vm209, %v758, -inf
      %763 = vmax.xlane.f32.xlu0 %v762
      %v764 = vpop.xlane.xlu0 %763
      %v765 = vsel %vm209, %v759, -inf
      %766 = vmax.xlane.f32.xlu0 %v765
      %v767 = vpop.xlane.xlu0 %766
      %v768 = vsel %vm209, %v760, -inf
      %769 = vmax.xlane.f32.xlu0 %v768
      %v770 = vpop.xlane.xlu0 %769
      %v771 = vsel %vm209, %v761, -inf
      %772 = vmax.xlane.f32.xlu0 %v771
      %v773 = vpop.xlane.xlu0 %772
      %v774 = vsub.f32 %v758, %v764
      %v775 = vsub.f32 %v759, %v767
      %v776 = vsub.f32 %v760, %v770
      %v777 = vsub.f32 %v761, %v773
      %v778 = vmul.f32 %v774, 1.442695
      %v779 = vpow.pop %v778
      %v780 = vmul.f32 %v775, 1.442695
      %v781 = vpow.pop %v780
      %v782 = vmul.f32 %v776, 1.442695
      %v783 = vpow.pop %v782
      %v784 = vmul.f32 %v777, 1.442695
      %v785 = vpow.pop %v784
      %v786 = vsel %vm209, %v779, 0.0
      %787 = vadd.xlane.f32.xlu0 %v786
      %v788 = vpop.xlane.xlu0 %787
      %v789 = vsel %vm209, %v781, 0.0
      %790 = vadd.xlane.f32.xlu0 %v789
      %v791 = vpop.xlane.xlu0 %790
      %v792 = vsel %vm209, %v783, 0.0
      %793 = vadd.xlane.f32.xlu0 %v792
      %v794 = vpop.xlane.xlu0 %793
      %v795 = vsel %vm209, %v785, 0.0
      %796 = vadd.xlane.f32.xlu0 %v795
      %v797 = vpop.xlane.xlu0 %796
      %v798 = vrcp.pop %v788
      %v799 = vrcp.pop %v791
      %v800 = vrcp.pop %v794
      %v801 = vrcp.pop %v797
      %v802 = vmul.f32 %v779, %v798
      %v803 = vmul.f32 %v781, %v799
      %v804 = vmul.f32 %v783, %v800
      %v805 = vmul.f32 %v785, %v801
      %v806 = vpack.c.bf16 %v803, %v802
      %v807 = vpack.c.bf16 %v805, %v804
      %808 = vrot.lane.b32.xlu0 %v133, 40
      %v809 = vpop.permute.xlu0 %808
      %810 = vrot.lane.b32.xlu0 %v134, 40
      %v811 = vpop.permute.xlu0 %810
      %v815 = vsel %vm209, %v806, 0
      %v818 = vsel %vm209, %v807, 0
      %820 = vmatprep.subr.bf16.mxu0 0
      %821 = vmatpush1.bf16.msra.mxu0 0
      %822 = vmatprep.subr.bf16.mxu0 0
      %823 = vmatpush1.bf16.msra.mxu0 0
      %824 = vmatprep.subr.bf16.mxu0 0
      %825 = vmatpush1.bf16.msra.mxu0 0
      %826 = vmatprep.subr.bf16.mxu0 0
      %827 = vmatpush1.bf16.msra.mxu0 0
      %828 = vmatprep.subr.bf16.mxu0 0
      %829 = vmatpush1.bf16.msra.mxu0 0
      %830 = vmatprep.subr.bf16.mxu0 0
      %831 = vmatpush1.bf16.msra.mxu0 0
      %832 = vmatprep.subr.bf16.mxu0 0
      %833 = vmatpush1.bf16.msra.mxu0 %v811
      %834 = vmatprep.subr.bf16.mxu0 0
      %835 = vmatpush1.bf16.msra.mxu0 %v809
      %836 = vmatprep.subr.bf16.mxu0 0
      %837 = vmatpush2.bf16.msra.mxu0 0
      %838 = vmatprep.subr.bf16.mxu0 0
      %839 = vmatpush2.bf16.msra.mxu0 0
      %840 = vmatprep.subr.bf16.mxu0 0
      %841 = vmatpush2.bf16.msra.mxu0 0
      %842 = vmatprep.subr.bf16.mxu0 0
      %843 = vmatpush2.bf16.msra.mxu0 0
      %844 = vmatprep.subr.bf16.mxu0 0
      %845 = vmatpush2.bf16.msra.mxu0 0
      %846 = vmatprep.subr.bf16.mxu0 0
      %847 = vmatpush2.bf16.msra.mxu0 0
      %848 = vmatprep.subr.bf16.mxu0 0
      %849 = vmatpush2.bf16.msra.mxu0 0
      %850 = vmatprep.subr.bf16.mxu0 0
      %851 = vmatpush2.bf16.msra.mxu0 0
      %852 = vmatprep.mubr.bf16.mxu0 0
      %853 = vmatmul.mubr.bf16.gmra.mxu0 %v815
      %v854 = vpop.f32.mrf.mxu0
      %v855 = vadd.f32 0.0, %v854
      %v856 = vpop.f32.mrf.mxu0
      %v857 = vpop.f32.mrf.mxu0
      %v858 = vadd.f32 0.0, %v857
      %v859 = vpop.f32.mrf.mxu0
      %860 = vmatprep.mubr.bf16.mxu0 0
      %861 = vmatmul.mubr.bf16.gmra.mxu0 %v818
      %v862 = vpop.f32.mrf.mxu0
      %v863 = vadd.f32 0.0, %v862
      %v864 = vpop.f32.mrf.mxu0
      %v865 = vpop.f32.mrf.mxu0
      %v866 = vadd.f32 0.0, %v865
      %v867 = vpop.f32.mrf.mxu0
      %868 = vdwg.mxu0
      %873 = vrot.lane.b32.xlu0 %v487, 8
      %v874 = vpop.permute.xlu0 %873
      %875 = vrot.lane.b32.xlu0 %v490, 8
      %v876 = vpop.permute.xlu0 %875
      %877 = vrot.lane.b32.xlu0 %v495, 8
      %v878 = vpop.permute.xlu0 %877
      %879 = vrot.lane.b32.xlu0 %v498, 8
      %v880 = vpop.permute.xlu0 %879
      %889 = vrot.lane.b32.xlu0 %v671, 16
      %v890 = vpop.permute.xlu0 %889
      %891 = vrot.lane.b32.xlu0 %v674, 16
      %v892 = vpop.permute.xlu0 %891
      %893 = vrot.lane.b32.xlu0 %v679, 16
      %v894 = vpop.permute.xlu0 %893
      %895 = vrot.lane.b32.xlu0 %v682, 16
      %v896 = vpop.permute.xlu0 %895
      %905 = vrot.lane.b32.xlu0 %v855, 24
      %v906 = vpop.permute.xlu0 %905
      %907 = vrot.lane.b32.xlu0 %v858, 24
      %v908 = vpop.permute.xlu0 %907
      %909 = vrot.lane.b32.xlu0 %v863, 24
      %v910 = vpop.permute.xlu0 %909
      %911 = vrot.lane.b32.xlu0 %v866, 24
      %v912 = vpop.permute.xlu0 %911
      %v917 = vsel %vm139, %v303, %v874
      %v918 = vsel %vm139, %v306, %v876
      %v919 = vsel %vm139, %v311, %v878
      %v920 = vsel %vm139, %v314, %v880
      %vm921 = vcmask 130048
      %v922 = vsel %vm921, %v917, %v890
      %v923 = vsel %vm921, %v918, %v892
      %v924 = vsel %vm921, %v919, %v894
      %v925 = vsel %vm921, %v920, %v896
      %vm926 = vcmask 195584
      %v927 = vsel %vm926, %v922, %v906
      %v928 = vsel %vm926, %v923, %v908
      %v929 = vsel %vm926, %v924, %v910
      %v930 = vsel %vm926, %v925, %v912
      %v931 = vpack.c.bf16 %v928, %v927
      %v932 = vpack.c.bf16 %v930, %v929
      %v935 = vunpack.c.l.b16 %v931
      %v936 = vunpack.c.h.b16 %v931
      %v937 = vunpack.c.l.b16 %v932
      %v938 = vunpack.c.h.b16 %v932
      %v939 = vpack.c.b16 %v935, %v935
      %v940 = vpack.c.b16 %v936, %v936
      %v941 = vpack.c.b16 %v937, %v937
      %v942 = vpack.c.b16 %v938, %v938
      %vm947 = vcmask 257024
      %948 = vst.msk [vmem:[%s116] sm:$0xf] %vm947, %v939
      %949 = vst.msk [vmem:[%s116 + $0x4] sm:$0xf] %vm947, %v940
      %950 = vst.msk [vmem:[%s116 + $0x8] sm:$0xf] %vm947, %v941
      %951 = vst.msk [vmem:[%s116 + $0xc] sm:$0xf] %vm947, %v942
      %p952 = scmp.lt.s32.totalorder %s12, 1
      %s953 = scalar_select %p952, %s12, 1
      %s954 = smul.addr %s953, 4
      %s955 = smul.addr %s954, 4
      %s956 = scalar_lea.vmem %s1, %s955
      // Predicated region
      $region25: #{vit_forward.14} parent=23 // pred_check
        %p957 = pneg %p56
      $region26: #{vit_forward.14} parent=23 // pred_check_branch
        %959 = sbr.rel (%p957) target = $region28
      $region27: #{vit_forward.14} parent=23 // pred_region
        _
      $region28: #{vit_forward.14} parent=23 // pred_fallthru
        _
    $region24: #{vit_forward.14} parent=5 // pred_fallthru
      _
    %p960 = scmp.le.s32.totalorder 2, %s7
    // Predicated region
    $region29: #{vit_forward.14} parent=5 // pred_check
      %p961 = pneg %p960
    $region30: #{vit_forward.14} parent=5 // pred_check_branch
      %963 = sbr.rel (%p961) target = $region32
    $region31: #{vit_forward.14} parent=5 // pred_region
      %s964 = ssub.s32 %s7, 2
      // Predicated region
      $region33: #{vit_forward.14} parent=31 // pred_check
        %p965 = pneg %p62
      $region34: #{vit_forward.14} parent=31 // pred_check_branch
        %967 = sbr.rel (%p965) target = $region36
      $region35: #{vit_forward.14} parent=31 // pred_region
        %p968 = scmp.lt.s32.totalorder %s13, 1
        %s969 = scalar_select %p968, %s13, 1
        %s970 = smul.addr %s969, 4
        %s971 = smul.addr %s970, 4
        %s972 = scalar_lea.vmem %s1, %s971
      $region36: #{vit_forward.14} parent=31 // pred_fallthru
        _
    $region32: #{vit_forward.14} parent=5 // pred_fallthru
      _
  $region6: #{vit_forward.14} parent=0 // loop_footer
    %s11 = sadd.s32 1, %s7
  $region7: #{vit_forward.14} parent=0 // loop_footer_branch
    %6 = sbr.rel target = $region3
  $region8: #{vit_forward.14} parent=0 // loop_exit
    _

// kernel: vit_forward.16
$region0: #{vit_forward.16}
  #allocation0 [shape = 'u32[]', space=smem, size = 0x4, offset = 0x4, fixed_abs, tag = 'smem constant byte address 0x4 - core index']
  #allocation1 [shape = 'u32[144,128]{1,0:T(1,128)}', space=vmem, size = 0x12000, scoped, tag = 'internal scratch']
  %s0 = inlined_call_operand.vmem [shape: f32[48,32], index: 0, kind: input, shape index: {}]
  %s1 = inlined_call_operand.vmem [shape: bf16[32,128], index: 1, kind: input, shape index: {}]
  %s2 = inlined_call_operand.vmem [shape: f32[1,128], index: 2, kind: input, shape index: {}]
  %s3 = inlined_call_operand.vmem [shape: f32[1,32], index: 3, kind: input, shape index: {}]
  %s4 = inlined_call_operand.vmem [shape: f32[1,32], index: 4, kind: input, shape index: {}]
  %s5 = inlined_call_operand.vmem [shape: bf16[48,128], index: 5, kind: output, shape index: {}]
  %s6 = sld [smem:[#allocation0]]
  $region30: #{vit_forward.16} parent=0
    _
  %s8 = ssub.s32 1, %s6
  %s9 = scalar_select 0, %s8, %s6
  // Predicated region
  $region2: #{vit_forward.16} parent=0 // pred_check
    _
  $region3: #{vit_forward.16} parent=0 // pred_check_branch
    %11 = sbr.rel (0) target = $region5
  $region4: #{vit_forward.16} parent=0 // pred_region
    _
  $region5: #{vit_forward.16} parent=0 // pred_fallthru
    _
  // Predicated region
  $region6: #{vit_forward.16} parent=0 // pred_check
    _
  $region7: #{vit_forward.16} parent=0 // pred_check_branch
    %13 = sbr.rel (0) target = $region9
  $region8: #{vit_forward.16} parent=0 // pred_region
    _
  $region9: #{vit_forward.16} parent=0 // pred_fallthru
    _
  // Predicated region
  $region10: #{vit_forward.16} parent=0 // pred_check
    _
  $region11: #{vit_forward.16} parent=0 // pred_check_branch
    %15 = sbr.rel (0) target = $region13
  $region12: #{vit_forward.16} parent=0 // pred_region
    _
  $region13: #{vit_forward.16} parent=0 // pred_fallthru
    _
  // Predicated region
  $region14: #{vit_forward.16} parent=0 // pred_check
    _
  $region15: #{vit_forward.16} parent=0 // pred_check_branch
    %17 = sbr.rel (0) target = $region17
  $region16: #{vit_forward.16} parent=0 // pred_region
    _
  $region17: #{vit_forward.16} parent=0 // pred_fallthru
    _
  // Predicated region
  $region18: #{vit_forward.16} parent=0 // pred_check
    _
  $region19: #{vit_forward.16} parent=0 // pred_check_branch
    %19 = sbr.rel (0) target = $region21
  $region20: #{vit_forward.16} parent=0 // pred_region
    _
  $region21: #{vit_forward.16} parent=0 // pred_fallthru
    _
  %v21 = vld [vmem:[%s0] sm:$0xff]
  %v22 = vld [vmem:[%s0 + $0x8] sm:$0xff]
  %v23 = vld [vmem:[%s0 + $0x10] sm:$0xff]
  %v24 = vld [vmem:[%s0 + $0x18] sm:$0xff]
  %v25 = vld [vmem:[%s0 + $0x20] sm:$0xff]
  %v26 = vld [vmem:[%s0 + $0x28] sm:$0xff]
  %vm27 = vcmask 261120
  %v28 = vsel %vm27, %v21, 0.0
  %29 = vadd.xlane.f32.xlu0 %v28
  %v30 = vpop.xlane.xlu0 %29
  %v31 = vsel %vm27, %v22, 0.0
  %32 = vadd.xlane.f32.xlu0 %v31
  %v33 = vpop.xlane.xlu0 %32
  %v34 = vsel %vm27, %v23, 0.0
  %35 = vadd.xlane.f32.xlu0 %v34
  %v36 = vpop.xlane.xlu0 %35
  %v37 = vsel %vm27, %v24, 0.0
  %38 = vadd.xlane.f32.xlu0 %v37
  %v39 = vpop.xlane.xlu0 %38
  %v40 = vsel %vm27, %v25, 0.0
  %41 = vadd.xlane.f32.xlu0 %v40
  %v42 = vpop.xlane.xlu0 %41
  %v43 = vsel %vm27, %v26, 0.0
  %44 = vadd.xlane.f32.xlu0 %v43
  %v45 = vpop.xlane.xlu0 %44
  %v46 = vrcp.pop 32.0
  %v47 = vmul.f32 %v30, %v46
  %v48 = vmul.f32 %v33, %v46
  %v49 = vmul.f32 %v36, %v46
  %v50 = vmul.f32 %v39, %v46
  %v51 = vmul.f32 %v42, %v46
  %v52 = vmul.f32 %v45, %v46
  %v53 = vsub.f32 %v21, %v47
  %v54 = vsub.f32 %v22, %v48
  %v55 = vsub.f32 %v23, %v49
  %v56 = vsub.f32 %v24, %v50
  %v57 = vsub.f32 %v25, %v51
  %v58 = vsub.f32 %v26, %v52
  %v59 = vmul.f32 %v53, %v53
  %v60 = vmul.f32 %v54, %v54
  %v61 = vmul.f32 %v55, %v55
  %v62 = vmul.f32 %v56, %v56
  %v63 = vmul.f32 %v57, %v57
  %v64 = vmul.f32 %v58, %v58
  %v65 = vsel %vm27, %v59, 0.0
  %66 = vadd.xlane.f32.xlu0 %v65
  %v67 = vpop.xlane.xlu0 %66
  %v68 = vsel %vm27, %v60, 0.0
  %69 = vadd.xlane.f32.xlu0 %v68
  %v70 = vpop.xlane.xlu0 %69
  %v71 = vsel %vm27, %v61, 0.0
  %72 = vadd.xlane.f32.xlu0 %v71
  %v73 = vpop.xlane.xlu0 %72
  %v74 = vsel %vm27, %v62, 0.0
  %75 = vadd.xlane.f32.xlu0 %v74
  %v76 = vpop.xlane.xlu0 %75
  %v77 = vsel %vm27, %v63, 0.0
  %78 = vadd.xlane.f32.xlu0 %v77
  %v79 = vpop.xlane.xlu0 %78
  %v80 = vsel %vm27, %v64, 0.0
  %81 = vadd.xlane.f32.xlu0 %v80
  %v82 = vpop.xlane.xlu0 %81
  %v83 = vmul.f32 %v67, %v46
  %v84 = vmul.f32 %v70, %v46
  %v85 = vmul.f32 %v73, %v46
  %v86 = vmul.f32 %v76, %v46
  %v87 = vmul.f32 %v79, %v46
  %v88 = vmul.f32 %v82, %v46
  %v89 = vadd.f32 %v83, 1e-05
  %v90 = vadd.f32 %v84, 1e-05
  %v91 = vadd.f32 %v85, 1e-05
  %v92 = vadd.f32 %v86, 1e-05
  %v93 = vadd.f32 %v87, 1e-05
  %v94 = vadd.f32 %v88, 1e-05
  %v95 = vrsqrt.pop %v89
  %v96 = vrsqrt.pop %v90
  %v97 = vrsqrt.pop %v91
  %v98 = vrsqrt.pop %v92
  %v99 = vrsqrt.pop %v93
  %v100 = vrsqrt.pop %v94
  %v101 = vmul.f32 %v53, %v95
  %v102 = vmul.f32 %v54, %v96
  %v103 = vmul.f32 %v55, %v97
  %v104 = vmul.f32 %v56, %v98
  %v105 = vmul.f32 %v57, %v99
  %v106 = vmul.f32 %v58, %v100
  %v107 = vld [vmem:[%s3] sm:$0x1]
  %v109 = vlaneseq
  %v110 = vshrl.u32 %v109, 7
  %v111 = vsub.s32 0, %v110
  %v112 = vrot.slane %v107, %v111
  %v114 = vmul.f32 %v101, %v112
  %v115 = vmul.f32 %v102, %v112
  %v116 = vmul.f32 %v103, %v112
  %v117 = vmul.f32 %v104, %v112
  %v118 = vmul.f32 %v105, %v112
  %v119 = vmul.f32 %v106, %v112
  %v120 = vld [vmem:[%s4] sm:$0x1]
  %v122 = vlaneseq
  %v123 = vshrl.u32 %v122, 7
  %v124 = vsub.s32 0, %v123
  %v125 = vrot.slane %v120, %v124
  %v127 = vadd.f32 %v114, %v125
  %v128 = vadd.f32 %v115, %v125
  %v129 = vadd.f32 %v116, %v125
  %v130 = vadd.f32 %v117, %v125
  %v131 = vadd.f32 %v118, %v125
  %v132 = vadd.f32 %v119, %v125
  %v133 = vpack.c.bf16 %v128, %v127
  %v134 = vpack.c.bf16 %v130, %v129
  %v135 = vpack.c.bf16 %v132, %v131
  %v136 = vld [vmem:[%s1] sm:$0xf]
  %v137 = vld [vmem:[%s1 + $0x4] sm:$0xf]
  %v138 = vld [vmem:[%s1 + $0x8] sm:$0xf]
  %v139 = vld [vmem:[%s1 + $0xc] sm:$0xf]
  %v140 = vld [vmem:[%s2] sm:$0x1]
  %v142 = vlaneseq
  %v143 = vshrl.u32 %v142, 7
  %v144 = vsub.s32 0, %v143
  %v145 = vrot.slane %v140, %v144
  %v151 = vunpack.c.l.b16 %v136
  %v152 = vunpack.c.l.b16 %v137
  %v153 = vunpack.c.l.b16 %v138
  %v154 = vunpack.c.l.b16 %v139
  %v155 = vpack.c.b16 %v152, %v151
  %v156 = vpack.c.b16 %v154, %v153
  %v160 = vsel %vm27, %v133, 0
  %v163 = vsel %vm27, %v134, 0
  %v166 = vsel %vm27, %v135, 0
  %168 = vmatprep.subr.bf16.mxu0 0
  %169 = vmatpush1.bf16.msra.mxu0 0
  %170 = vmatprep.subr.bf16.mxu0 0
  %171 = vmatpush1.bf16.msra.mxu0 0
  %172 = vmatprep.subr.bf16.mxu0 0
  %173 = vmatpush1.bf16.msra.mxu0 0
  %174 = vmatprep.subr.bf16.mxu0 0
  %175 = vmatpush1.bf16.msra.mxu0 0
  %176 = vmatprep.subr.bf16.mxu0 0
  %177 = vmatpush1.bf16.msra.mxu0 0
  %178 = vmatprep.subr.bf16.mxu0 0
  %179 = vmatpush1.bf16.msra.mxu0 0
  %180 = vmatprep.subr.bf16.mxu0 0
  %181 = vmatpush1.bf16.msra.mxu0 %v156
  %182 = vmatprep.subr.bf16.mxu0 0
  %183 = vmatpush1.bf16.msra.mxu0 %v155
  %184 = vmatprep.subr.bf16.mxu0 0
  %185 = vmatpush2.bf16.msra.mxu0 0
  %186 = vmatprep.subr.bf16.mxu0 0
  %187 = vmatpush2.bf16.msra.mxu0 0
  %188 = vmatprep.subr.bf16.mxu0 0
  %189 = vmatpush2.bf16.msra.mxu0 0
  %190 = vmatprep.subr.bf16.mxu0 0
  %191 = vmatpush2.bf16.msra.mxu0 0
  %192 = vmatprep.subr.bf16.mxu0 0
  %193 = vmatpush2.bf16.msra.mxu0 0
  %194 = vmatprep.subr.bf16.mxu0 0
  %195 = vmatpush2.bf16.msra.mxu0 0
  %196 = vmatprep.subr.bf16.mxu0 0
  %197 = vmatpush2.bf16.msra.mxu0 0
  %198 = vmatprep.subr.bf16.mxu0 0
  %199 = vmatpush2.bf16.msra.mxu0 0
  %200 = vmatprep.mubr.bf16.mxu0 0
  %201 = vmatmul.mubr.bf16.gmra.mxu0 %v160
  %v202 = vpop.f32.mrf.mxu0
  %v203 = vadd.f32 %v145, %v202
  %v204 = vpop.f32.mrf.mxu0
  %v205 = vpop.f32.mrf.mxu0
  %v206 = vadd.f32 %v145, %v205
  %v207 = vpop.f32.mrf.mxu0
  %208 = vmatprep.mubr.bf16.mxu0 0
  %209 = vmatmul.mubr.bf16.gmra.mxu0 %v163
  %v210 = vpop.f32.mrf.mxu0
  %v211 = vadd.f32 %v145, %v210
  %v212 = vpop.f32.mrf.mxu0
  %v213 = vpop.f32.mrf.mxu0
  %v214 = vadd.f32 %v145, %v213
  %v215 = vpop.f32.mrf.mxu0
  %216 = vmatprep.mubr.bf16.mxu0 0
  %217 = vmatmul.mubr.bf16.gmra.mxu0 %v166
  %v218 = vpop.f32.mrf.mxu0
  %v219 = vadd.f32 %v145, %v218
  %v220 = vpop.f32.mrf.mxu0
  %v221 = vpop.f32.mrf.mxu0
  %v222 = vadd.f32 %v145, %v221
  %v223 = vpop.f32.mrf.mxu0
  %224 = vdwg.mxu0
  %v225 = vmul.f32 %v203, %v203
  %v226 = vmul.f32 %v206, %v206
  %v227 = vmul.f32 %v211, %v211
  %v228 = vmul.f32 %v214, %v214
  %v229 = vmul.f32 %v219, %v219
  %v230 = vmul.f32 %v222, %v222
  %v231 = vmul.f32 %v203, %v225
  %v232 = vmul.f32 %v206, %v226
  %v233 = vmul.f32 %v211, %v227
  %v234 = vmul.f32 %v214, %v228
  %v235 = vmul.f32 %v219, %v229
  %v236 = vmul.f32 %v222, %v230
  %v237 = vmul.f32 %v231, 0.044715
  %v238 = vmul.f32 %v232, 0.044715
  %v239 = vmul.f32 %v233, 0.044715
  %v240 = vmul.f32 %v234, 0.044715
  %v241 = vmul.f32 %v235, 0.044715
  %v242 = vmul.f32 %v236, 0.044715
  %v243 = vadd.f32 %v203, %v237
  %v244 = vadd.f32 %v206, %v238
  %v245 = vadd.f32 %v211, %v239
  %v246 = vadd.f32 %v214, %v240
  %v247 = vadd.f32 %v219, %v241
  %v248 = vadd.f32 %v222, %v242
  %v249 = vmul.f32 %v243, 0.7978846
  %v250 = vmul.f32 %v244, 0.7978846
  %v251 = vmul.f32 %v245, 0.7978846
  %v252 = vmul.f32 %v246, 0.7978846
  %v253 = vmul.f32 %v247, 0.7978846
  %v254 = vmul.f32 %v248, 0.7978846
  %v255 = vtanh.pop %v249
  %v256 = vtanh.pop %v250
  %v257 = vtanh.pop %v251
  %v258 = vtanh.pop %v252
  %v259 = vtanh.pop %v253
  %v260 = vtanh.pop %v254
  %v261 = vadd.f32 %v255, 1.0
  %v262 = vadd.f32 %v256, 1.0
  %v263 = vadd.f32 %v257, 1.0
  %v264 = vadd.f32 %v258, 1.0
  %v265 = vadd.f32 %v259, 1.0
  %v266 = vadd.f32 %v260, 1.0
  %v267 = vmul.f32 %v261, 0.5
  %v268 = vmul.f32 %v262, 0.5
  %v269 = vmul.f32 %v263, 0.5
  %v270 = vmul.f32 %v264, 0.5
  %v271 = vmul.f32 %v265, 0.5
  %v272 = vmul.f32 %v266, 0.5
  %v273 = vmul.f32 %v203, %v267
  %v274 = vmul.f32 %v206, %v268
  %v275 = vmul.f32 %v211, %v269
  %v276 = vmul.f32 %v214, %v270
  %v277 = vmul.f32 %v219, %v271
  %v278 = vmul.f32 %v222, %v272
  %v279 = vpack.c.bf16 %v274, %v273
  %v280 = vpack.c.bf16 %v276, %v275
  %v281 = vpack.c.bf16 %v278, %v277
  %v285 = vunpack.c.l.b16 %v279
  %v286 = vunpack.c.h.b16 %v279
  %v287 = vunpack.c.l.b16 %v280
  %v288 = vunpack.c.h.b16 %v280
  %v289 = vunpack.c.l.b16 %v281
  %v290 = vunpack.c.h.b16 %v281
  %v291 = vpack.c.b16 %v285, %v285
  %v292 = vpack.c.b16 %v286, %v286
  %v293 = vpack.c.b16 %v287, %v287
  %v294 = vpack.c.b16 %v288, %v288
  %v295 = vpack.c.b16 %v289, %v289
  %v296 = vpack.c.b16 %v290, %v290
  %303 = vst [vmem:[%s5] sm:$0xf] %v291
  %304 = vst [vmem:[%s5 + $0x4] sm:$0xf] %v292
  %305 = vst [vmem:[%s5 + $0x8] sm:$0xf] %v293
  %306 = vst [vmem:[%s5 + $0xc] sm:$0xf] %v294
  %307 = vst [vmem:[%s5 + $0x10] sm:$0xf] %v295
  %308 = vst [vmem:[%s5 + $0x14] sm:$0xf] %v296
  // Predicated region
  $region22: #{vit_forward.16} parent=0 // pred_check
    _
  $region23: #{vit_forward.16} parent=0 // pred_check_branch
    %310 = sbr.rel (0) target = $region25
  $region24: #{vit_forward.16} parent=0 // pred_region
    _
  $region25: #{vit_forward.16} parent=0 // pred_fallthru
    _
  // Predicated region
  $region26: #{vit_forward.16} parent=0 // pred_check
    _
  $region27: #{vit_forward.16} parent=0 // pred_check_branch
    %312 = sbr.rel (0) target = $region29
  $region28: #{vit_forward.16} parent=0 // pred_region
    _
  $region29: #{vit_forward.16} parent=0 // pred_fallthru
    _

// kernel: vit_forward.23
$region0: #{vit_forward.23}
  #allocation0 [shape = 'u32[]', space=smem, size = 0x4, offset = 0x4, fixed_abs, tag = 'smem constant byte address 0x4 - core index']
  #allocation1 [shape = 'u32[144,128]{1,0:T(1,128)}', space=vmem, size = 0x12000, scoped, tag = 'internal scratch']
  %s0 = inlined_call_operand.vmem [shape: f32[8,32], index: 0, kind: input, shape index: {}]
  %s1 = inlined_call_operand.vmem [shape: f32[1,32], index: 1, kind: input, shape index: {}]
  %s2 = inlined_call_operand.vmem [shape: f32[1,32], index: 2, kind: input, shape index: {}]
  %s3 = inlined_call_operand.vmem [shape: f32[8,32], index: 3, kind: output, shape index: {}]
  %s4 = sld [smem:[#allocation0]]
  $region22: #{vit_forward.23} parent=0
    _
  %s6 = ssub.s32 1, %s4
  %s7 = scalar_select 0, %s6, %s4
  // Predicated region
  $region2: #{vit_forward.23} parent=0 // pred_check
    _
  $region3: #{vit_forward.23} parent=0 // pred_check_branch
    %9 = sbr.rel (0) target = $region5
  $region4: #{vit_forward.23} parent=0 // pred_region
    _
  $region5: #{vit_forward.23} parent=0 // pred_fallthru
    _
  // Predicated region
  $region6: #{vit_forward.23} parent=0 // pred_check
    _
  $region7: #{vit_forward.23} parent=0 // pred_check_branch
    %11 = sbr.rel (0) target = $region9
  $region8: #{vit_forward.23} parent=0 // pred_region
    _
  $region9: #{vit_forward.23} parent=0 // pred_fallthru
    _
  // Predicated region
  $region10: #{vit_forward.23} parent=0 // pred_check
    _
  $region11: #{vit_forward.23} parent=0 // pred_check_branch
    %13 = sbr.rel (0) target = $region13
  $region12: #{vit_forward.23} parent=0 // pred_region
    _
  $region13: #{vit_forward.23} parent=0 // pred_fallthru
    _
  %v14 = vld [vmem:[%s0] sm:$0xff]
  %vm15 = vcmask 261120
  %v16 = vsel %vm15, %v14, 0.0
  %17 = vadd.xlane.f32.xlu0 %v16
  %v18 = vpop.xlane.xlu0 %17
  %v19 = vrcp.pop 32.0
  %v20 = vmul.f32 %v18, %v19
  %v21 = vsub.f32 %v14, %v20
  %v22 = vmul.f32 %v21, %v21
  %v23 = vsel %vm15, %v22, 0.0
  %24 = vadd.xlane.f32.xlu0 %v23
  %v25 = vpop.xlane.xlu0 %24
  %v26 = vmul.f32 %v25, %v19
  %v27 = vadd.f32 %v26, 1e-05
  %v28 = vrsqrt.pop %v27
  %v29 = vmul.f32 %v21, %v28
  %v30 = vld [vmem:[%s1] sm:$0x1]
  %v32 = vlaneseq
  %v33 = vshrl.u32 %v32, 7
  %v34 = vsub.s32 0, %v33
  %v35 = vrot.slane %v30, %v34
  %v37 = vmul.f32 %v29, %v35
  %v38 = vld [vmem:[%s2] sm:$0x1]
  %v40 = vlaneseq
  %v41 = vshrl.u32 %v40, 7
  %v42 = vsub.s32 0, %v41
  %v43 = vrot.slane %v38, %v42
  %v45 = vadd.f32 %v37, %v43
  %46 = vst.msk [vmem:[%s3] sm:$0xff] %vm15, %v45
  // Predicated region
  $region14: #{vit_forward.23} parent=0 // pred_check
    _
  $region15: #{vit_forward.23} parent=0 // pred_check_branch
    %48 = sbr.rel (0) target = $region17
  $region16: #{vit_forward.23} parent=0 // pred_region
    _
  $region17: #{vit_forward.23} parent=0 // pred_fallthru
    _
  // Predicated region
  $region18: #{vit_forward.23} parent=0 // pred_check
    _
  $region19: #{vit_forward.23} parent=0 // pred_check_branch
    %50 = sbr.rel (0) target = $region21
  $region20: #{vit_forward.23} parent=0 // pred_region
    _
  $region21: #{vit_forward.23} parent=0 // pred_fallthru
    _

// kernel: vit_forward.17
$region0: #{vit_forward.17}
  #allocation0 [shape = 'u32[]', space=smem, size = 0x4, offset = 0x4, fixed_abs, tag = 'smem constant byte address 0x4 - core index']
  #allocation1 [shape = 'u32[144,128]{1,0:T(1,128)}', space=vmem, size = 0x12000, scoped, tag = 'internal scratch']
  %s0 = inlined_call_operand.vmem [shape: bf16[48,128], index: 0, kind: input, shape index: {}]
  %s1 = inlined_call_operand.vmem [shape: bf16[128,128], index: 1, kind: input, shape index: {}]
  %s2 = inlined_call_operand.vmem [shape: f32[1,128], index: 2, kind: input, shape index: {}]
  %s3 = inlined_call_operand.vmem [shape: f32[48,128], index: 3, kind: input, shape index: {}]
  %s4 = inlined_call_operand.vmem [shape: f32[48,128], index: 4, kind: output, shape index: {}]
  %s5 = sld [smem:[#allocation0]]
  $region26: #{vit_forward.17} parent=0
    _
  %s7 = ssub.s32 1, %s5
  %s8 = scalar_select 0, %s7, %s5
  // Predicated region
  $region2: #{vit_forward.17} parent=0 // pred_check
    _
  $region3: #{vit_forward.17} parent=0 // pred_check_branch
    %10 = sbr.rel (0) target = $region5
  $region4: #{vit_forward.17} parent=0 // pred_region
    _
  $region5: #{vit_forward.17} parent=0 // pred_fallthru
    _
  // Predicated region
  $region6: #{vit_forward.17} parent=0 // pred_check
    _
  $region7: #{vit_forward.17} parent=0 // pred_check_branch
    %12 = sbr.rel (0) target = $region9
  $region8: #{vit_forward.17} parent=0 // pred_region
    _
  $region9: #{vit_forward.17} parent=0 // pred_fallthru
    _
  // Predicated region
  $region10: #{vit_forward.17} parent=0 // pred_check
    _
  $region11: #{vit_forward.17} parent=0 // pred_check_branch
    %14 = sbr.rel (0) target = $region13
  $region12: #{vit_forward.17} parent=0 // pred_region
    _
  $region13: #{vit_forward.17} parent=0 // pred_fallthru
    _
  // Predicated region
  $region14: #{vit_forward.17} parent=0 // pred_check
    _
  $region15: #{vit_forward.17} parent=0 // pred_check_branch
    %16 = sbr.rel (0) target = $region17
  $region16: #{vit_forward.17} parent=0 // pred_region
    _
  $region17: #{vit_forward.17} parent=0 // pred_fallthru
    _
  %v18 = vld [vmem:[%s0] sm:$0xf]
  %v19 = vld [vmem:[%s0 + $0x4] sm:$0xf]
  %v20 = vld [vmem:[%s0 + $0x8] sm:$0xf]
  %v21 = vld [vmem:[%s0 + $0xc] sm:$0xf]
  %v22 = vld [vmem:[%s0 + $0x10] sm:$0xf]
  %v23 = vld [vmem:[%s0 + $0x14] sm:$0xf]
  %v24 = vld [vmem:[%s1] sm:$0xf]
  %v25 = vld [vmem:[%s1 + $0x4] sm:$0xf]
  %v26 = vld [vmem:[%s1 + $0x8] sm:$0xf]
  %v27 = vld [vmem:[%s1 + $0xc] sm:$0xf]
  %v28 = vld [vmem:[%s1 + $0x10] sm:$0xf]
  %v29 = vld [vmem:[%s1 + $0x14] sm:$0xf]
  %v30 = vld [vmem:[%s1 + $0x18] sm:$0xf]
  %v31 = vld [vmem:[%s1 + $0x1c] sm:$0xf]
  %v32 = vld [vmem:[%s1 + $0x20] sm:$0xf]
  %v33 = vld [vmem:[%s1 + $0x24] sm:$0xf]
  %v34 = vld [vmem:[%s1 + $0x28] sm:$0xf]
  %v35 = vld [vmem:[%s1 + $0x2c] sm:$0xf]
  %v36 = vld [vmem:[%s1 + $0x30] sm:$0xf]
  %v37 = vld [vmem:[%s1 + $0x34] sm:$0xf]
  %v38 = vld [vmem:[%s1 + $0x38] sm:$0xf]
  %v39 = vld [vmem:[%s1 + $0x3c] sm:$0xf]
  %v40 = vld [vmem:[%s2] sm:$0x1]
  %v42 = vlaneseq
  %v43 = vshrl.u32 %v42, 7
  %v44 = vsub.s32 0, %v43
  %v45 = vrot.slane %v40, %v44
  %v53 = vunpack.c.l.b16 %v18
  %v54 = vunpack.c.l.b16 %v19
  %v55 = vunpack.c.l.b16 %v20
  %v56 = vunpack.c.l.b16 %v21
  %v57 = vunpack.c.l.b16 %v22
  %v58 = vunpack.c.l.b16 %v23
  %v59 = vpack.c.b16 %v54, %v53
  %v60 = vpack.c.b16 %v56, %v55
  %v61 = vpack.c.b16 %v58, %v57
  %v81 = vunpack.c.l.b16 %v24
  %v82 = vunpack.c.l.b16 %v25
  %v83 = vunpack.c.l.b16 %v26
  %v84 = vunpack.c.l.b16 %v27
  %v85 = vunpack.c.l.b16 %v28
  %v86 = vunpack.c.l.b16 %v29
  %v87 = vunpack.c.l.b16 %v30
  %v88 = vunpack.c.l.b16 %v31
  %v89 = vunpack.c.l.b16 %v32
  %v90 = vunpack.c.l.b16 %v33
  %v91 = vunpack.c.l.b16 %v34
  %v92 = vunpack.c.l.b16 %v35
  %v93 = vunpack.c.l.b16 %v36
  %v94 = vunpack.c.l.b16 %v37
  %v95 = vunpack.c.l.b16 %v38
  %v96 = vunpack.c.l.b16 %v39
  %v97 = vpack.c.b16 %v82, %v81
  %v98 = vpack.c.b16 %v84, %v83
  %v99 = vpack.c.b16 %v86, %v85
  %v100 = vpack.c.b16 %v88, %v87
  %v101 = vpack.c.b16 %v90, %v89
  %v102 = vpack.c.b16 %v92, %v91
  %v103 = vpack.c.b16 %v94, %v93
  %v104 = vpack.c.b16 %v96, %v95
  %113 = vmatprep.subr.bf16.mxu0 0
  %114 = vmatpush1.bf16.msra.mxu0 %v104
  %115 = vmatprep.subr.bf16.mxu0 0
  %116 = vmatpush1.bf16.msra.mxu0 %v103
  %117 = vmatprep.subr.bf16.mxu0 0
  %118 = vmatpush1.bf16.msra.mxu0 %v102
  %119 = vmatprep.subr.bf16.mxu0 0
  %120 = vmatpush1.bf16.msra.mxu0 %v101
  %121 = vmatprep.subr.bf16.mxu0 0
  %122 = vmatpush1.bf16.msra.mxu0 %v100
  %123 = vmatprep.subr.bf16.mxu0 0
  %124 = vmatpush1.bf16.msra.mxu0 %v99
  %125 = vmatprep.subr.bf16.mxu0 0
  %126 = vmatpush1.bf16.msra.mxu0 %v98
  %127 = vmatprep.subr.bf16.mxu0 0
  %128 = vmatpush1.bf16.msra.mxu0 %v97
  %129 = vmatprep.subr.bf16.mxu0 0
  %130 = vmatpush2.bf16.msra.mxu0 0
  %131 = vmatprep.subr.bf16.mxu0 0
  %132 = vmatpush2.bf16.msra.mxu0 0
  %133 = vmatprep.subr.bf16.mxu0 0
  %134 = vmatpush2.bf16.msra.mxu0 0
  %135 = vmatprep.subr.bf16.mxu0 0
  %136 = vmatpush2.bf16.msra.mxu0 0
  %137 = vmatprep.subr.bf16.mxu0 0
  %138 = vmatpush2.bf16.msra.mxu0 0
  %139 = vmatprep.subr.bf16.mxu0 0
  %140 = vmatpush2.bf16.msra.mxu0 0
  %141 = vmatprep.subr.bf16.mxu0 0
  %142 = vmatpush2.bf16.msra.mxu0 0
  %143 = vmatprep.subr.bf16.mxu0 0
  %144 = vmatpush2.bf16.msra.mxu0 0
  %145 = vmatprep.mubr.bf16.mxu0 0
  %146 = vmatmul.mubr.bf16.gmra.mxu0 %v59
  %v147 = vpop.f32.mrf.mxu0
  %v148 = vadd.f32 %v45, %v147
  %v149 = vpop.f32.mrf.mxu0
  %v150 = vpop.f32.mrf.mxu0
  %v151 = vadd.f32 %v45, %v150
  %v152 = vpop.f32.mrf.mxu0
  %153 = vmatprep.mubr.bf16.mxu0 0
  %154 = vmatmul.mubr.bf16.gmra.mxu0 %v60
  %v155 = vpop.f32.mrf.mxu0
  %v156 = vadd.f32 %v45, %v155
  %v157 = vpop.f32.mrf.mxu0
  %v158 = vpop.f32.mrf.mxu0
  %v159 = vadd.f32 %v45, %v158
  %v160 = vpop.f32.mrf.mxu0
  %161 = vmatprep.mubr.bf16.mxu0 0
  %162 = vmatmul.mubr.bf16.gmra.mxu0 %v61
  %v163 = vpop.f32.mrf.mxu0
  %v164 = vadd.f32 %v45, %v163
  %v165 = vpop.f32.mrf.mxu0
  %v166 = vpop.f32.mrf.mxu0
  %v167 = vadd.f32 %v45, %v166
  %v168 = vpop.f32.mrf.mxu0
  %169 = vdwg.mxu0
  %v170 = vld [vmem:[%s3] sm:$0xff]
  %v171 = vld [vmem:[%s3 + $0x8] sm:$0xff]
  %v172 = vld [vmem:[%s3 + $0x10] sm:$0xff]
  %v173 = vld [vmem:[%s3 + $0x18] sm:$0xff]
  %v174 = vld [vmem:[%s3 + $0x20] sm:$0xff]
  %v175 = vld [vmem:[%s3 + $0x28] sm:$0xff]
  %v176 = vadd.f32 %v148, %v170
  %v177 = vadd.f32 %v151, %v171
  %v178 = vadd.f32 %v156, %v172
  %v179 = vadd.f32 %v159, %v173
  %v180 = vadd.f32 %v164, %v174
  %v181 = vadd.f32 %v167, %v175
  %182 = vst [vmem:[%s4] sm:$0xff] %v176
  %183 = vst [vmem:[%s4 + $0x8] sm:$0xff] %v177
  %184 = vst [vmem:[%s4 + $0x10] sm:$0xff] %v178
  %185 = vst [vmem:[%s4 + $0x18] sm:$0xff] %v179
  %186 = vst [vmem:[%s4 + $0x20] sm:$0xff] %v180
  %187 = vst [vmem:[%s4 + $0x28] sm:$0xff] %v181
  // Predicated region
  $region18: #{vit_forward.17} parent=0 // pred_check
    _
  $region19: #{vit_forward.17} parent=0 // pred_check_branch
    %189 = sbr.rel (0) target = $region21
  $region20: #{vit_forward.17} parent=0 // pred_region
    _
  $region21: #{vit_forward.17} parent=0 // pred_fallthru
    _
  // Predicated region
  $region22: #{vit_forward.17} parent=0 // pred_check
    _
  $region23: #{vit_forward.17} parent=0 // pred_check_branch
    %191 = sbr.rel (0) target = $region25
  $region24: #{vit_forward.17} parent=0 // pred_region
    _
  $region25: #{vit_forward.17} parent=0 // pred_fallthru
    _

</llo_original>
